<compile_context>
chip_gen: v7x
topology: tpu7x:2x2x1
jax: 0.10.0
libtpu: 0.0.40
codegen_flags: <defaults>
</compile_context>

<pallas_src>
import jax
import jax.numpy as jnp
from jax import lax
from jax.experimental import pallas as pl
from jax.experimental.pallas import tpu as pltpu

# ---------------- Renderer configuration (small synthetic sizes) ----------------
HEIGHT = 16
WIDTH = 16
N_POINTS = 256          # n_points
K_STEPS = 6             # k_steps
SKIP_FIRST_K = 2        # skip_first_k
PALETTE_FIDELITY = 15   # palette table has PALETTE_FIDELITY + 1 RGBA rows
INITIAL_SIGMA = 2.0
VAR_SCALE = 1.5         # output scale of the stand-in FunctionSet variation
X_LEFT, X_RIGHT = -1.0, 1.0
Y_TOP, Y_BOTTOM = 1.0, -1.0


def _function_set(xy, c, fw_t, fb_col):
    """Deterministic stand-in for FunctionSet, lane-major.

    xy: (2, P), c: (1, P), fw_t: (3, 3) (= fw transposed), fb_col: (3, 1).
    Keeps xy bounded in (-VAR_SCALE, VAR_SCALE) and c in (0, 1).
    Written with plain elementwise jnp ops so the Pallas kernel and the pure-JAX
    reference trace the exact same arithmetic (bin indices match bit-exactly).
    """
    z = (fw_t[:, 0:1] * xy[0:1, :] + fw_t[:, 1:2] * xy[1:2, :]
         + fw_t[:, 2:3] * c + fb_col)                 # (3, P)
    r = z / (1.0 + jnp.abs(z))                        # bounded rational variation
    xy_new = VAR_SCALE * r[0:2, :]
    c_new = 0.5 + 0.5 * r[2:3, :]
    return xy_new, c_new


# --------------------------------- Pallas kernel ---------------------------------
def renderer_kernel(xy0_ref, c0_ref, fw_t_ref, fb_ref, pal_t_ref,
                    minv_ref, rangev_ref, img_ref):
    fw_t = fw_t_ref[...]         # (3, 3)   stand-in FunctionSet weights (transposed)
    fb = fb_ref[...]             # (3, 1)
    pal_t = pal_t_ref[...]       # (4, F+1) RGBA palette, transposed
    minv = minv_ref[...]         # (2, 1)   min_vec (column)
    rangev = rangev_ref[...]     # (2, 1)   range_vec (column)

    # Constant iotas, hoisted out of the fully unrolled k loop.
    pal_iota = lax.broadcasted_iota(
        jnp.int32, (PALETTE_FIDELITY + 1, N_POINTS), 0)        # palette-row id
    bin_iota = lax.broadcasted_iota(
        jnp.int32, (HEIGHT * WIDTH, N_POINTS), 0)              # flattened bin id

    xy = xy0_ref[...]            # (2, P)
    c = c0_ref[...]              # (1, P)
    img = jnp.zeros((4, HEIGHT * WIDTH), jnp.float32)

    for k in range(K_STEPS):     # static unroll (K_STEPS = 6)
        # points = function_set(points)
        xy, c = _function_set(xy, c, fw_t, fb)

        if k < SKIP_FIRST_K:
            # Skipped steps do no palette / one-hot / scatter work at all.
            continue

        # ---- palette lookup: fused blended one-hot + single dot -> (4, P) colors
        _colors = c * PALETTE_FIDELITY                 # (1, P)
        cf = jnp.floor(_colors)
        cc = jnp.ceil(_colors)
        t = _colors - cf                               # (1, P)
        fid = cf.astype(jnp.int32)
        cid = cc.astype(jnp.int32)
        blended_oh = ((pal_iota == fid).astype(jnp.float32) * (1.0 - t)
                      + (pal_iota == cid).astype(jnp.float32) * t)   # (F+1, P)
        color = jnp.dot(pal_t, blended_oh,
                        preferred_element_type=jnp.float32)          # (4, P)

        # ---- convert_locations_to_bin_indices: ((xy - min_vec) * range_vec).long()
        # (.astype(int32) truncates toward zero, matching torch .long())
        bins = ((xy - minv) * rangev).astype(jnp.int32)              # (2, P)
        xb = bins[0:1, :]
        yb = bins[1:2, :]
        # Bounds pairing replicates the PyTorch spec (x vs width / y vs height);
        # benign here since HEIGHT == WIDTH.
        in_b = (xb >= 0) & (xb < WIDTH) & (yb >= 0) & (yb < HEIGHT)  # (1, P)
        color_masked = color * in_b.astype(jnp.float32)              # (4, P)

        # ---- scatter-add img_flat[ch, xb*W + yb] += color_masked[ch, :]
        # as ONE matmul contracted over the point axis (A @ B^T form; both
        # operands lane-major, output (4, H*W) lane-dense).
        flat = xb * WIDTH + yb                                       # (1, P)
        bin_oh = (bin_iota == flat).astype(jnp.float32)              # (H*W, P)
        img = img + lax.dot_general(
            color_masked, bin_oh,
            dimension_numbers=(((1,), (1,)), ((), ())),              # contract P
            preferred_element_type=jnp.float32)                      # (4, H*W)

    img_ref[...] = img


def render_forward(xy0, c0, fs_w, fs_b, palette, min_vec, range_vec):
    # One-time layout plumbing in the wrapper (never per step / per kernel op):
    # lane-major points and column-form parameters, transposed palette.
    xy0_t = xy0.T                    # (2, P)
    c0_t = c0.T                      # (1, P)
    fw_t = fs_w.T                    # (3, 3)
    fb_col = fs_b.T                  # (3, 1)
    pal_t = palette.T                # (4, F+1)
    minv_col = min_vec.T             # (2, 1)
    rangev_col = range_vec.T         # (2, 1)

    def full(shape):
        return pl.BlockSpec(shape, lambda i, _s=shape: (0,) * len(_s))

    img_flat = pl.pallas_call(
        renderer_kernel,
        out_shape=jax.ShapeDtypeStruct((4, HEIGHT * WIDTH), jnp.float32),
        grid=(1,),
        in_specs=[full(xy0_t.shape), full(c0_t.shape), full(fw_t.shape),
                  full(fb_col.shape), full(pal_t.shape),
                  full(minv_col.shape), full(rangev_col.shape)],
        out_specs=full((4, HEIGHT * WIDTH)),
        compiler_params=pltpu.CompilerParams(
            dimension_semantics=("arbitrary",)),
    )(xy0_t, c0_t, fw_t, fb_col, pal_t, minv_col, rangev_col)
    # Layout-only reshape back to the PyTorch raw_image convention (4, H, W).
    return img_flat.reshape(4, HEIGHT, WIDTH)


# --------------------------- pure-JAX reference (checking) ---------------------------
def renderer_reference(xy0_t, c0_t, fw_t, fb_col, pal, minv_col, rangev_col):
    """Pure-JAX reference, lane-major inputs, gather-based palette + scatter-add."""
    img = jnp.zeros((4, HEIGHT, WIDTH), jnp.float32)
    xy, c = xy0_t, c0_t
    for k in range(K_STEPS):
        xy, c = _function_set(xy, c, fw_t, fb_col)
        if k >= SKIP_FIRST_K:
            _colors = c[0, :] * PALETTE_FIDELITY               # (P,)
            cf = jnp.floor(_colors)
            cc = jnp.ceil(_colors)
            t = (_colors - cf)[:, None]                        # (P, 1)
            colorv = (t * pal[cc.astype(jnp.int32)]
                      + (1.0 - t) * pal[cf.astype(jnp.int32)])  # (P, 4)
            bins = ((xy - minv_col) * rangev_col).astype(jnp.int32)   # (2, P)
            xb, yb = bins[0, :], bins[1, :]
            inb = (xb >= 0) & (xb < WIDTH) & (yb >= 0) & (yb < HEIGHT)
            w = inb.astype(jnp.float32)
            xb_c = jnp.clip(xb, 0, HEIGHT - 1)
            yb_c = jnp.clip(yb, 0, WIDTH - 1)
            for ch in range(4):
                img = img.at[ch, xb_c, yb_c].add(colorv[:, ch] * w)
    return img


# -------------------------------------- main --------------------------------------
if __name__ == "__main__":
    key = jax.random.PRNGKey(0)
    k1, k2, k3, k4 = jax.random.split(key, 4)

    # xy ~ Normal(0, initial_sigma), c ~ Uniform(0, 1)  (torch.distributions glue)
    xy0 = jax.random.normal(k1, (N_POINTS, 2), jnp.float32) * INITIAL_SIGMA
    c0 = jax.random.uniform(k2, (N_POINTS, 1), jnp.float32)

    # deterministic stand-in FunctionSet parameters
    fs_w = (jax.random.normal(k3, (3, 3), jnp.float32) * 0.8).astype(jnp.float32)
    fs_b = (jax.random.normal(k4, (1, 3), jnp.float32) * 0.3).astype(jnp.float32)

    # min_vec / range_vec exactly as in Renderer.__init__
    x_min = min(X_LEFT, X_RIGHT)
    x_range = max(X_LEFT, X_RIGHT) - x_min
    y_min = min(Y_TOP, Y_BOTTOM)
    y_range = max(Y_TOP, Y_BOTTOM) - y_min
    min_vec = jnp.array([[x_min, y_min]], jnp.float32)
    range_vec = jnp.array([[WIDTH / x_range, HEIGHT / y_range]], jnp.float32)

    # deterministic RGBA palette (synthetic stand-in for matplotlib's viridis)
    levels = jnp.linspace(0.0, 1.0, PALETTE_FIDELITY + 1)
    palette = jnp.stack(
        [levels, levels ** 2, 1.0 - levels, jnp.ones_like(levels)], axis=1
    ).astype(jnp.float32)

    img = render_forward(xy0, c0, fs_w, fs_b, palette, min_vec, range_vec)
    img = jax.block_until_ready(img)

    ref = jax.block_until_ready(
        renderer_reference(xy0.T, c0.T, fs_w.T, fs_b.T, palette,
                           min_vec.T, range_vec.T))

    assert img.shape == (4, HEIGHT, WIDTH) and img.dtype == jnp.float32
    assert bool(jnp.all(jnp.isfinite(img)))
    rel_l1 = float(jnp.sum(jnp.abs(img - ref)) /
                   jnp.maximum(jnp.sum(jnp.abs(ref)), 1.0))
    assert rel_l1 < 5e-3, f"kernel/reference mismatch: rel_l1={rel_l1}"
    print("KERNEL_OK")
</pallas_src>

<mosaic_0001>
module attributes {stable_mosaic.version = 11 : i64} {
  func.func @renderer_kernel(%arg0: i32, %arg1: memref<2x256xf32, #tpu.memory_space<vmem>>, %arg2: memref<1x256xf32, #tpu.memory_space<vmem>>, %arg3: memref<3x3xf32, #tpu.memory_space<vmem>>, %arg4: memref<3x1xf32, #tpu.memory_space<vmem>>, %arg5: memref<4x16xf32, #tpu.memory_space<vmem>>, %arg6: memref<2x1xf32, #tpu.memory_space<vmem>>, %arg7: memref<2x1xf32, #tpu.memory_space<vmem>>, %arg8: memref<4x256xf32, #tpu.memory_space<vmem>>) attributes {dimension_semantics = [#tpu.dimension_semantics<arbitrary>], iteration_bounds = array<i64: 1>, scalar_prefetch = 0 : i64, scratch_operands = 0 : i64, tpu.core_type = #tpu.core_type<tc>, window_params = [{pipeline_mode = #tpu.pipeline_mode<synchronous>, transform_indices = @transform_0, window_bounds = array<i64: 2, 256>}, {pipeline_mode = #tpu.pipeline_mode<synchronous>, transform_indices = @transform_1, window_bounds = array<i64: 1, 256>}, {pipeline_mode = #tpu.pipeline_mode<synchronous>, transform_indices = @transform_2, window_bounds = array<i64: 3, 3>}, {pipeline_mode = #tpu.pipeline_mode<synchronous>, transform_indices = @transform_3, window_bounds = array<i64: 3, 1>}, {pipeline_mode = #tpu.pipeline_mode<synchronous>, transform_indices = @transform_4, window_bounds = array<i64: 4, 16>}, {pipeline_mode = #tpu.pipeline_mode<synchronous>, transform_indices = @transform_5, window_bounds = array<i64: 2, 1>}, {pipeline_mode = #tpu.pipeline_mode<synchronous>, transform_indices = @transform_6, window_bounds = array<i64: 2, 1>}, {pipeline_mode = #tpu.pipeline_mode<synchronous>, transform_indices = @transform_7, window_bounds = array<i64: 4, 256>}]} {
    %c0 = arith.constant 0 : index
    %c0_0 = arith.constant 0 : index
    %0 = vector.load %arg3[%c0, %c0_0] : memref<3x3xf32, #tpu.memory_space<vmem>>, vector<3x3xf32>
    %c0_1 = arith.constant 0 : index
    %c0_2 = arith.constant 0 : index
    %1 = vector.load %arg4[%c0_1, %c0_2] : memref<3x1xf32, #tpu.memory_space<vmem>>, vector<3x1xf32>
    %c0_3 = arith.constant 0 : index
    %c0_4 = arith.constant 0 : index
    %2 = vector.load %arg5[%c0_3, %c0_4] : memref<4x16xf32, #tpu.memory_space<vmem>>, vector<4x16xf32>
    %c0_5 = arith.constant 0 : index
    %c0_6 = arith.constant 0 : index
    %3 = vector.load %arg6[%c0_5, %c0_6] : memref<2x1xf32, #tpu.memory_space<vmem>>, vector<2x1xf32>
    %c0_7 = arith.constant 0 : index
    %c0_8 = arith.constant 0 : index
    %4 = vector.load %arg7[%c0_7, %c0_8] : memref<2x1xf32, #tpu.memory_space<vmem>>, vector<2x1xf32>
    %5 = tpu.iota {dimensions = array<i32: 0>} : vector<16x256xi32>
    %6 = tpu.iota {dimensions = array<i32: 0>} : vector<256x256xi32>
    %c0_9 = arith.constant 0 : index
    %c0_10 = arith.constant 0 : index
    %7 = vector.load %arg1[%c0_9, %c0_10] : memref<2x256xf32, #tpu.memory_space<vmem>>, vector<2x256xf32>
    %c0_11 = arith.constant 0 : index
    %c0_12 = arith.constant 0 : index
    %8 = vector.load %arg2[%c0_11, %c0_12] : memref<1x256xf32, #tpu.memory_space<vmem>>, vector<1x256xf32>
    %cst = arith.constant 0.000000e+00 : f32
    %9 = vector.broadcast %cst : f32 to vector<4x256xf32>
    %10 = vector.extract_strided_slice %0 {offsets = [0, 0], sizes = [3, 1], strides = [1, 1]} : vector<3x3xf32> to vector<3x1xf32>
    %11 = vector.extract_strided_slice %7 {offsets = [0, 0], sizes = [1, 256], strides = [1, 1]} : vector<2x256xf32> to vector<1x256xf32>
    %12 = vector.broadcast %10 : vector<3x1xf32> to vector<3x256xf32>
    %13 = vector.broadcast %11 : vector<1x256xf32> to vector<3x256xf32>
    %14 = arith.mulf %12, %13 : vector<3x256xf32>
    %15 = vector.extract_strided_slice %0 {offsets = [0, 1], sizes = [3, 1], strides = [1, 1]} : vector<3x3xf32> to vector<3x1xf32>
    %16 = vector.extract_strided_slice %7 {offsets = [1, 0], sizes = [1, 256], strides = [1, 1]} : vector<2x256xf32> to vector<1x256xf32>
    %17 = vector.broadcast %15 : vector<3x1xf32> to vector<3x256xf32>
    %18 = vector.broadcast %16 : vector<1x256xf32> to vector<3x256xf32>
    %19 = arith.mulf %17, %18 : vector<3x256xf32>
    %20 = arith.addf %14, %19 : vector<3x256xf32>
    %21 = vector.extract_strided_slice %0 {offsets = [0, 2], sizes = [3, 1], strides = [1, 1]} : vector<3x3xf32> to vector<3x1xf32>
    %22 = vector.broadcast %21 : vector<3x1xf32> to vector<3x256xf32>
    %23 = vector.broadcast %8 : vector<1x256xf32> to vector<3x256xf32>
    %24 = arith.mulf %22, %23 : vector<3x256xf32>
    %25 = arith.addf %20, %24 : vector<3x256xf32>
    %26 = vector.broadcast %1 : vector<3x1xf32> to vector<3x256xf32>
    %27 = arith.addf %25, %26 : vector<3x256xf32>
    %28 = math.absf %27 : vector<3x256xf32>
    %cst_13 = arith.constant 1.000000e+00 : f32
    %29 = vector.broadcast %cst_13 : f32 to vector<3x256xf32>
    %30 = arith.addf %29, %28 : vector<3x256xf32>
    %31 = arith.divf %27, %30 : vector<3x256xf32>
    %32 = vector.extract_strided_slice %31 {offsets = [0, 0], sizes = [2, 256], strides = [1, 1]} : vector<3x256xf32> to vector<2x256xf32>
    %cst_14 = arith.constant 1.500000e+00 : f32
    %33 = vector.broadcast %cst_14 : f32 to vector<2x256xf32>
    %34 = arith.mulf %33, %32 : vector<2x256xf32>
    %35 = vector.extract_strided_slice %31 {offsets = [2, 0], sizes = [1, 256], strides = [1, 1]} : vector<3x256xf32> to vector<1x256xf32>
    %cst_15 = arith.constant 5.000000e-01 : f32
    %36 = vector.broadcast %cst_15 : f32 to vector<1x256xf32>
    %37 = arith.mulf %36, %35 : vector<1x256xf32>
    %cst_16 = arith.constant 5.000000e-01 : f32
    %38 = vector.broadcast %cst_16 : f32 to vector<1x256xf32>
    %39 = arith.addf %38, %37 : vector<1x256xf32>
    %40 = vector.extract_strided_slice %0 {offsets = [0, 0], sizes = [3, 1], strides = [1, 1]} : vector<3x3xf32> to vector<3x1xf32>
    %41 = vector.extract_strided_slice %34 {offsets = [0, 0], sizes = [1, 256], strides = [1, 1]} : vector<2x256xf32> to vector<1x256xf32>
    %42 = vector.broadcast %40 : vector<3x1xf32> to vector<3x256xf32>
    %43 = vector.broadcast %41 : vector<1x256xf32> to vector<3x256xf32>
    %44 = arith.mulf %42, %43 : vector<3x256xf32>
    %45 = vector.extract_strided_slice %0 {offsets = [0, 1], sizes = [3, 1], strides = [1, 1]} : vector<3x3xf32> to vector<3x1xf32>
    %46 = vector.extract_strided_slice %34 {offsets = [1, 0], sizes = [1, 256], strides = [1, 1]} : vector<2x256xf32> to vector<1x256xf32>
    %47 = vector.broadcast %45 : vector<3x1xf32> to vector<3x256xf32>
    %48 = vector.broadcast %46 : vector<1x256xf32> to vector<3x256xf32>
    %49 = arith.mulf %47, %48 : vector<3x256xf32>
    %50 = arith.addf %44, %49 : vector<3x256xf32>
    %51 = vector.extract_strided_slice %0 {offsets = [0, 2], sizes = [3, 1], strides = [1, 1]} : vector<3x3xf32> to vector<3x1xf32>
    %52 = vector.broadcast %51 : vector<3x1xf32> to vector<3x256xf32>
    %53 = vector.broadcast %39 : vector<1x256xf32> to vector<3x256xf32>
    %54 = arith.mulf %52, %53 : vector<3x256xf32>
    %55 = arith.addf %50, %54 : vector<3x256xf32>
    %56 = vector.broadcast %1 : vector<3x1xf32> to vector<3x256xf32>
    %57 = arith.addf %55, %56 : vector<3x256xf32>
    %58 = math.absf %57 : vector<3x256xf32>
    %cst_17 = arith.constant 1.000000e+00 : f32
    %59 = vector.broadcast %cst_17 : f32 to vector<3x256xf32>
    %60 = arith.addf %59, %58 : vector<3x256xf32>
    %61 = arith.divf %57, %60 : vector<3x256xf32>
    %62 = vector.extract_strided_slice %61 {offsets = [0, 0], sizes = [2, 256], strides = [1, 1]} : vector<3x256xf32> to vector<2x256xf32>
    %cst_18 = arith.constant 1.500000e+00 : f32
    %63 = vector.broadcast %cst_18 : f32 to vector<2x256xf32>
    %64 = arith.mulf %63, %62 : vector<2x256xf32>
    %65 = vector.extract_strided_slice %61 {offsets = [2, 0], sizes = [1, 256], strides = [1, 1]} : vector<3x256xf32> to vector<1x256xf32>
    %cst_19 = arith.constant 5.000000e-01 : f32
    %66 = vector.broadcast %cst_19 : f32 to vector<1x256xf32>
    %67 = arith.mulf %66, %65 : vector<1x256xf32>
    %cst_20 = arith.constant 5.000000e-01 : f32
    %68 = vector.broadcast %cst_20 : f32 to vector<1x256xf32>
    %69 = arith.addf %68, %67 : vector<1x256xf32>
    %70 = vector.extract_strided_slice %0 {offsets = [0, 0], sizes = [3, 1], strides = [1, 1]} : vector<3x3xf32> to vector<3x1xf32>
    %71 = vector.extract_strided_slice %64 {offsets = [0, 0], sizes = [1, 256], strides = [1, 1]} : vector<2x256xf32> to vector<1x256xf32>
    %72 = vector.broadcast %70 : vector<3x1xf32> to vector<3x256xf32>
    %73 = vector.broadcast %71 : vector<1x256xf32> to vector<3x256xf32>
    %74 = arith.mulf %72, %73 : vector<3x256xf32>
    %75 = vector.extract_strided_slice %0 {offsets = [0, 1], sizes = [3, 1], strides = [1, 1]} : vector<3x3xf32> to vector<3x1xf32>
    %76 = vector.extract_strided_slice %64 {offsets = [1, 0], sizes = [1, 256], strides = [1, 1]} : vector<2x256xf32> to vector<1x256xf32>
    %77 = vector.broadcast %75 : vector<3x1xf32> to vector<3x256xf32>
    %78 = vector.broadcast %76 : vector<1x256xf32> to vector<3x256xf32>
    %79 = arith.mulf %77, %78 : vector<3x256xf32>
    %80 = arith.addf %74, %79 : vector<3x256xf32>
    %81 = vector.extract_strided_slice %0 {offsets = [0, 2], sizes = [3, 1], strides = [1, 1]} : vector<3x3xf32> to vector<3x1xf32>
    %82 = vector.broadcast %81 : vector<3x1xf32> to vector<3x256xf32>
    %83 = vector.broadcast %69 : vector<1x256xf32> to vector<3x256xf32>
    %84 = arith.mulf %82, %83 : vector<3x256xf32>
    %85 = arith.addf %80, %84 : vector<3x256xf32>
    %86 = vector.broadcast %1 : vector<3x1xf32> to vector<3x256xf32>
    %87 = arith.addf %85, %86 : vector<3x256xf32>
    %88 = math.absf %87 : vector<3x256xf32>
    %cst_21 = arith.constant 1.000000e+00 : f32
    %89 = vector.broadcast %cst_21 : f32 to vector<3x256xf32>
    %90 = arith.addf %89, %88 : vector<3x256xf32>
    %91 = arith.divf %87, %90 : vector<3x256xf32>
    %92 = vector.extract_strided_slice %91 {offsets = [0, 0], sizes = [2, 256], strides = [1, 1]} : vector<3x256xf32> to vector<2x256xf32>
    %cst_22 = arith.constant 1.500000e+00 : f32
    %93 = vector.broadcast %cst_22 : f32 to vector<2x256xf32>
    %94 = arith.mulf %93, %92 : vector<2x256xf32>
    %95 = vector.extract_strided_slice %91 {offsets = [2, 0], sizes = [1, 256], strides = [1, 1]} : vector<3x256xf32> to vector<1x256xf32>
    %cst_23 = arith.constant 5.000000e-01 : f32
    %96 = vector.broadcast %cst_23 : f32 to vector<1x256xf32>
    %97 = arith.mulf %96, %95 : vector<1x256xf32>
    %cst_24 = arith.constant 5.000000e-01 : f32
    %98 = vector.broadcast %cst_24 : f32 to vector<1x256xf32>
    %99 = arith.addf %98, %97 : vector<1x256xf32>
    %cst_25 = arith.constant 1.500000e+01 : f32
    %100 = vector.broadcast %cst_25 : f32 to vector<1x256xf32>
    %101 = arith.mulf %99, %100 : vector<1x256xf32>
    %102 = math.floor %101 : vector<1x256xf32>
    %103 = math.ceil %101 : vector<1x256xf32>
    %104 = arith.subf %101, %102 : vector<1x256xf32>
    %105 = arith.fptosi %102 : vector<1x256xf32> to vector<1x256xi32>
    %106 = arith.fptosi %103 : vector<1x256xf32> to vector<1x256xi32>
    %107 = vector.broadcast %105 : vector<1x256xi32> to vector<16x256xi32>
    %108 = arith.cmpi eq, %5, %107 : vector<16x256xi32>
    %109 = arith.extui %108 : vector<16x256xi1> to vector<16x256xi32>
    %110 = arith.sitofp %109 : vector<16x256xi32> to vector<16x256xf32>
    %cst_26 = arith.constant 1.000000e+00 : f32
    %111 = vector.broadcast %cst_26 : f32 to vector<1x256xf32>
    %112 = arith.subf %111, %104 : vector<1x256xf32>
    %113 = vector.broadcast %112 : vector<1x256xf32> to vector<16x256xf32>
    %114 = arith.mulf %110, %113 : vector<16x256xf32>
    %115 = vector.broadcast %106 : vector<1x256xi32> to vector<16x256xi32>
    %116 = arith.cmpi eq, %5, %115 : vector<16x256xi32>
    %117 = arith.extui %116 : vector<16x256xi1> to vector<16x256xi32>
    %118 = arith.sitofp %117 : vector<16x256xi32> to vector<16x256xf32>
    %119 = vector.broadcast %104 : vector<1x256xf32> to vector<16x256xf32>
    %120 = arith.mulf %118, %119 : vector<16x256xf32>
    %121 = arith.addf %114, %120 : vector<16x256xf32>
    %cst_27 = arith.constant dense<0.000000e+00> : vector<4x256xf32>
    %122 = tpu.matmul %2, %121, %cst_27 {dimension_numbers = #tpu.dot_dimension_numbers<[1], [0], [0], [1], [0, 0, 1, 1], [], []>} : vector<4x16xf32>, vector<16x256xf32>, vector<4x256xf32> -> vector<4x256xf32>
    %123 = vector.broadcast %3 : vector<2x1xf32> to vector<2x256xf32>
    %124 = arith.subf %94, %123 : vector<2x256xf32>
    %125 = vector.broadcast %4 : vector<2x1xf32> to vector<2x256xf32>
    %126 = arith.mulf %124, %125 : vector<2x256xf32>
    %127 = arith.fptosi %126 : vector<2x256xf32> to vector<2x256xi32>
    %128 = vector.extract_strided_slice %127 {offsets = [0, 0], sizes = [1, 256], strides = [1, 1]} : vector<2x256xi32> to vector<1x256xi32>
    %129 = vector.extract_strided_slice %127 {offsets = [1, 0], sizes = [1, 256], strides = [1, 1]} : vector<2x256xi32> to vector<1x256xi32>
    %c0_i32 = arith.constant 0 : i32
    %130 = vector.broadcast %c0_i32 : i32 to vector<1x256xi32>
    %131 = arith.cmpi sge, %128, %130 : vector<1x256xi32>
    %c16_i32 = arith.constant 16 : i32
    %132 = vector.broadcast %c16_i32 : i32 to vector<1x256xi32>
    %133 = arith.cmpi slt, %128, %132 : vector<1x256xi32>
    %134 = arith.andi %131, %133 : vector<1x256xi1>
    %c0_i32_28 = arith.constant 0 : i32
    %135 = vector.broadcast %c0_i32_28 : i32 to vector<1x256xi32>
    %136 = arith.cmpi sge, %129, %135 : vector<1x256xi32>
    %137 = arith.andi %134, %136 : vector<1x256xi1>
    %c16_i32_29 = arith.constant 16 : i32
    %138 = vector.broadcast %c16_i32_29 : i32 to vector<1x256xi32>
    %139 = arith.cmpi slt, %129, %138 : vector<1x256xi32>
    %140 = arith.andi %137, %139 : vector<1x256xi1>
    %141 = arith.extui %140 : vector<1x256xi1> to vector<1x256xi32>
    %142 = arith.sitofp %141 : vector<1x256xi32> to vector<1x256xf32>
    %143 = vector.broadcast %142 : vector<1x256xf32> to vector<4x256xf32>
    %144 = arith.mulf %122, %143 : vector<4x256xf32>
    %c16_i32_30 = arith.constant 16 : i32
    %145 = vector.broadcast %c16_i32_30 : i32 to vector<1x256xi32>
    %146 = arith.muli %128, %145 : vector<1x256xi32>
    %147 = arith.addi %146, %129 : vector<1x256xi32>
    %148 = vector.broadcast %147 : vector<1x256xi32> to vector<256x256xi32>
    %149 = arith.cmpi eq, %6, %148 : vector<256x256xi32>
    %150 = arith.extui %149 : vector<256x256xi1> to vector<256x256xi32>
    %151 = arith.sitofp %150 : vector<256x256xi32> to vector<256x256xf32>
    %cst_31 = arith.constant dense<0.000000e+00> : vector<4x256xf32>
    %152 = tpu.matmul %144, %151, %cst_31 {dimension_numbers = #tpu.dot_dimension_numbers<[1], [1], [0], [0], [0, 0, 1, 0], [], []>} : vector<4x256xf32>, vector<256x256xf32>, vector<4x256xf32> -> vector<4x256xf32>
    %153 = arith.addf %9, %152 : vector<4x256xf32>
    %154 = vector.extract_strided_slice %0 {offsets = [0, 0], sizes = [3, 1], strides = [1, 1]} : vector<3x3xf32> to vector<3x1xf32>
    %155 = vector.extract_strided_slice %94 {offsets = [0, 0], sizes = [1, 256], strides = [1, 1]} : vector<2x256xf32> to vector<1x256xf32>
    %156 = vector.broadcast %154 : vector<3x1xf32> to vector<3x256xf32>
    %157 = vector.broadcast %155 : vector<1x256xf32> to vector<3x256xf32>
    %158 = arith.mulf %156, %157 : vector<3x256xf32>
    %159 = vector.extract_strided_slice %0 {offsets = [0, 1], sizes = [3, 1], strides = [1, 1]} : vector<3x3xf32> to vector<3x1xf32>
    %160 = vector.extract_strided_slice %94 {offsets = [1, 0], sizes = [1, 256], strides = [1, 1]} : vector<2x256xf32> to vector<1x256xf32>
    %161 = vector.broadcast %159 : vector<3x1xf32> to vector<3x256xf32>
    %162 = vector.broadcast %160 : vector<1x256xf32> to vector<3x256xf32>
    %163 = arith.mulf %161, %162 : vector<3x256xf32>
    %164 = arith.addf %158, %163 : vector<3x256xf32>
    %165 = vector.extract_strided_slice %0 {offsets = [0, 2], sizes = [3, 1], strides = [1, 1]} : vector<3x3xf32> to vector<3x1xf32>
    %166 = vector.broadcast %165 : vector<3x1xf32> to vector<3x256xf32>
    %167 = vector.broadcast %99 : vector<1x256xf32> to vector<3x256xf32>
    %168 = arith.mulf %166, %167 : vector<3x256xf32>
    %169 = arith.addf %164, %168 : vector<3x256xf32>
    %170 = vector.broadcast %1 : vector<3x1xf32> to vector<3x256xf32>
    %171 = arith.addf %169, %170 : vector<3x256xf32>
    %172 = math.absf %171 : vector<3x256xf32>
    %cst_32 = arith.constant 1.000000e+00 : f32
    %173 = vector.broadcast %cst_32 : f32 to vector<3x256xf32>
    %174 = arith.addf %173, %172 : vector<3x256xf32>
    %175 = arith.divf %171, %174 : vector<3x256xf32>
    %176 = vector.extract_strided_slice %175 {offsets = [0, 0], sizes = [2, 256], strides = [1, 1]} : vector<3x256xf32> to vector<2x256xf32>
    %cst_33 = arith.constant 1.500000e+00 : f32
    %177 = vector.broadcast %cst_33 : f32 to vector<2x256xf32>
    %178 = arith.mulf %177, %176 : vector<2x256xf32>
    %179 = vector.extract_strided_slice %175 {offsets = [2, 0], sizes = [1, 256], strides = [1, 1]} : vector<3x256xf32> to vector<1x256xf32>
    %cst_34 = arith.constant 5.000000e-01 : f32
    %180 = vector.broadcast %cst_34 : f32 to vector<1x256xf32>
    %181 = arith.mulf %180, %179 : vector<1x256xf32>
    %cst_35 = arith.constant 5.000000e-01 : f32
    %182 = vector.broadcast %cst_35 : f32 to vector<1x256xf32>
    %183 = arith.addf %182, %181 : vector<1x256xf32>
    %cst_36 = arith.constant 1.500000e+01 : f32
    %184 = vector.broadcast %cst_36 : f32 to vector<1x256xf32>
    %185 = arith.mulf %183, %184 : vector<1x256xf32>
    %186 = math.floor %185 : vector<1x256xf32>
    %187 = math.ceil %185 : vector<1x256xf32>
    %188 = arith.subf %185, %186 : vector<1x256xf32>
    %189 = arith.fptosi %186 : vector<1x256xf32> to vector<1x256xi32>
    %190 = arith.fptosi %187 : vector<1x256xf32> to vector<1x256xi32>
    %191 = vector.broadcast %189 : vector<1x256xi32> to vector<16x256xi32>
    %192 = arith.cmpi eq, %5, %191 : vector<16x256xi32>
    %193 = arith.extui %192 : vector<16x256xi1> to vector<16x256xi32>
    %194 = arith.sitofp %193 : vector<16x256xi32> to vector<16x256xf32>
    %cst_37 = arith.constant 1.000000e+00 : f32
    %195 = vector.broadcast %cst_37 : f32 to vector<1x256xf32>
    %196 = arith.subf %195, %188 : vector<1x256xf32>
    %197 = vector.broadcast %196 : vector<1x256xf32> to vector<16x256xf32>
    %198 = arith.mulf %194, %197 : vector<16x256xf32>
    %199 = vector.broadcast %190 : vector<1x256xi32> to vector<16x256xi32>
    %200 = arith.cmpi eq, %5, %199 : vector<16x256xi32>
    %201 = arith.extui %200 : vector<16x256xi1> to vector<16x256xi32>
    %202 = arith.sitofp %201 : vector<16x256xi32> to vector<16x256xf32>
    %203 = vector.broadcast %188 : vector<1x256xf32> to vector<16x256xf32>
    %204 = arith.mulf %202, %203 : vector<16x256xf32>
    %205 = arith.addf %198, %204 : vector<16x256xf32>
    %cst_38 = arith.constant dense<0.000000e+00> : vector<4x256xf32>
    %206 = tpu.matmul %2, %205, %cst_38 {dimension_numbers = #tpu.dot_dimension_numbers<[1], [0], [0], [1], [0, 0, 1, 1], [], []>} : vector<4x16xf32>, vector<16x256xf32>, vector<4x256xf32> -> vector<4x256xf32>
    %207 = vector.broadcast %3 : vector<2x1xf32> to vector<2x256xf32>
    %208 = arith.subf %178, %207 : vector<2x256xf32>
    %209 = vector.broadcast %4 : vector<2x1xf32> to vector<2x256xf32>
    %210 = arith.mulf %208, %209 : vector<2x256xf32>
    %211 = arith.fptosi %210 : vector<2x256xf32> to vector<2x256xi32>
    %212 = vector.extract_strided_slice %211 {offsets = [0, 0], sizes = [1, 256], strides = [1, 1]} : vector<2x256xi32> to vector<1x256xi32>
    %213 = vector.extract_strided_slice %211 {offsets = [1, 0], sizes = [1, 256], strides = [1, 1]} : vector<2x256xi32> to vector<1x256xi32>
    %c0_i32_39 = arith.constant 0 : i32
    %214 = vector.broadcast %c0_i32_39 : i32 to vector<1x256xi32>
    %215 = arith.cmpi sge, %212, %214 : vector<1x256xi32>
    %c16_i32_40 = arith.constant 16 : i32
    %216 = vector.broadcast %c16_i32_40 : i32 to vector<1x256xi32>
    %217 = arith.cmpi slt, %212, %216 : vector<1x256xi32>
    %218 = arith.andi %215, %217 : vector<1x256xi1>
    %c0_i32_41 = arith.constant 0 : i32
    %219 = vector.broadcast %c0_i32_41 : i32 to vector<1x256xi32>
    %220 = arith.cmpi sge, %213, %219 : vector<1x256xi32>
    %221 = arith.andi %218, %220 : vector<1x256xi1>
    %c16_i32_42 = arith.constant 16 : i32
    %222 = vector.broadcast %c16_i32_42 : i32 to vector<1x256xi32>
    %223 = arith.cmpi slt, %213, %222 : vector<1x256xi32>
    %224 = arith.andi %221, %223 : vector<1x256xi1>
    %225 = arith.extui %224 : vector<1x256xi1> to vector<1x256xi32>
    %226 = arith.sitofp %225 : vector<1x256xi32> to vector<1x256xf32>
    %227 = vector.broadcast %226 : vector<1x256xf32> to vector<4x256xf32>
    %228 = arith.mulf %206, %227 : vector<4x256xf32>
    %c16_i32_43 = arith.constant 16 : i32
    %229 = vector.broadcast %c16_i32_43 : i32 to vector<1x256xi32>
    %230 = arith.muli %212, %229 : vector<1x256xi32>
    %231 = arith.addi %230, %213 : vector<1x256xi32>
    %232 = vector.broadcast %231 : vector<1x256xi32> to vector<256x256xi32>
    %233 = arith.cmpi eq, %6, %232 : vector<256x256xi32>
    %234 = arith.extui %233 : vector<256x256xi1> to vector<256x256xi32>
    %235 = arith.sitofp %234 : vector<256x256xi32> to vector<256x256xf32>
    %cst_44 = arith.constant dense<0.000000e+00> : vector<4x256xf32>
    %236 = tpu.matmul %228, %235, %cst_44 {dimension_numbers = #tpu.dot_dimension_numbers<[1], [1], [0], [0], [0, 0, 1, 0], [], []>} : vector<4x256xf32>, vector<256x256xf32>, vector<4x256xf32> -> vector<4x256xf32>
    %237 = arith.addf %153, %236 : vector<4x256xf32>
    %238 = vector.extract_strided_slice %0 {offsets = [0, 0], sizes = [3, 1], strides = [1, 1]} : vector<3x3xf32> to vector<3x1xf32>
    %239 = vector.extract_strided_slice %178 {offsets = [0, 0], sizes = [1, 256], strides = [1, 1]} : vector<2x256xf32> to vector<1x256xf32>
    %240 = vector.broadcast %238 : vector<3x1xf32> to vector<3x256xf32>
    %241 = vector.broadcast %239 : vector<1x256xf32> to vector<3x256xf32>
    %242 = arith.mulf %240, %241 : vector<3x256xf32>
    %243 = vector.extract_strided_slice %0 {offsets = [0, 1], sizes = [3, 1], strides = [1, 1]} : vector<3x3xf32> to vector<3x1xf32>
    %244 = vector.extract_strided_slice %178 {offsets = [1, 0], sizes = [1, 256], strides = [1, 1]} : vector<2x256xf32> to vector<1x256xf32>
    %245 = vector.broadcast %243 : vector<3x1xf32> to vector<3x256xf32>
    %246 = vector.broadcast %244 : vector<1x256xf32> to vector<3x256xf32>
    %247 = arith.mulf %245, %246 : vector<3x256xf32>
    %248 = arith.addf %242, %247 : vector<3x256xf32>
    %249 = vector.extract_strided_slice %0 {offsets = [0, 2], sizes = [3, 1], strides = [1, 1]} : vector<3x3xf32> to vector<3x1xf32>
    %250 = vector.broadcast %249 : vector<3x1xf32> to vector<3x256xf32>
    %251 = vector.broadcast %183 : vector<1x256xf32> to vector<3x256xf32>
    %252 = arith.mulf %250, %251 : vector<3x256xf32>
    %253 = arith.addf %248, %252 : vector<3x256xf32>
    %254 = vector.broadcast %1 : vector<3x1xf32> to vector<3x256xf32>
    %255 = arith.addf %253, %254 : vector<3x256xf32>
    %256 = math.absf %255 : vector<3x256xf32>
    %cst_45 = arith.constant 1.000000e+00 : f32
    %257 = vector.broadcast %cst_45 : f32 to vector<3x256xf32>
    %258 = arith.addf %257, %256 : vector<3x256xf32>
    %259 = arith.divf %255, %258 : vector<3x256xf32>
    %260 = vector.extract_strided_slice %259 {offsets = [0, 0], sizes = [2, 256], strides = [1, 1]} : vector<3x256xf32> to vector<2x256xf32>
    %cst_46 = arith.constant 1.500000e+00 : f32
    %261 = vector.broadcast %cst_46 : f32 to vector<2x256xf32>
    %262 = arith.mulf %261, %260 : vector<2x256xf32>
    %263 = vector.extract_strided_slice %259 {offsets = [2, 0], sizes = [1, 256], strides = [1, 1]} : vector<3x256xf32> to vector<1x256xf32>
    %cst_47 = arith.constant 5.000000e-01 : f32
    %264 = vector.broadcast %cst_47 : f32 to vector<1x256xf32>
    %265 = arith.mulf %264, %263 : vector<1x256xf32>
    %cst_48 = arith.constant 5.000000e-01 : f32
    %266 = vector.broadcast %cst_48 : f32 to vector<1x256xf32>
    %267 = arith.addf %266, %265 : vector<1x256xf32>
    %cst_49 = arith.constant 1.500000e+01 : f32
    %268 = vector.broadcast %cst_49 : f32 to vector<1x256xf32>
    %269 = arith.mulf %267, %268 : vector<1x256xf32>
    %270 = math.floor %269 : vector<1x256xf32>
    %271 = math.ceil %269 : vector<1x256xf32>
    %272 = arith.subf %269, %270 : vector<1x256xf32>
    %273 = arith.fptosi %270 : vector<1x256xf32> to vector<1x256xi32>
    %274 = arith.fptosi %271 : vector<1x256xf32> to vector<1x256xi32>
    %275 = vector.broadcast %273 : vector<1x256xi32> to vector<16x256xi32>
    %276 = arith.cmpi eq, %5, %275 : vector<16x256xi32>
    %277 = arith.extui %276 : vector<16x256xi1> to vector<16x256xi32>
    %278 = arith.sitofp %277 : vector<16x256xi32> to vector<16x256xf32>
    %cst_50 = arith.constant 1.000000e+00 : f32
    %279 = vector.broadcast %cst_50 : f32 to vector<1x256xf32>
    %280 = arith.subf %279, %272 : vector<1x256xf32>
    %281 = vector.broadcast %280 : vector<1x256xf32> to vector<16x256xf32>
    %282 = arith.mulf %278, %281 : vector<16x256xf32>
    %283 = vector.broadcast %274 : vector<1x256xi32> to vector<16x256xi32>
    %284 = arith.cmpi eq, %5, %283 : vector<16x256xi32>
    %285 = arith.extui %284 : vector<16x256xi1> to vector<16x256xi32>
    %286 = arith.sitofp %285 : vector<16x256xi32> to vector<16x256xf32>
    %287 = vector.broadcast %272 : vector<1x256xf32> to vector<16x256xf32>
    %288 = arith.mulf %286, %287 : vector<16x256xf32>
    %289 = arith.addf %282, %288 : vector<16x256xf32>
    %cst_51 = arith.constant dense<0.000000e+00> : vector<4x256xf32>
    %290 = tpu.matmul %2, %289, %cst_51 {dimension_numbers = #tpu.dot_dimension_numbers<[1], [0], [0], [1], [0, 0, 1, 1], [], []>} : vector<4x16xf32>, vector<16x256xf32>, vector<4x256xf32> -> vector<4x256xf32>
    %291 = vector.broadcast %3 : vector<2x1xf32> to vector<2x256xf32>
    %292 = arith.subf %262, %291 : vector<2x256xf32>
    %293 = vector.broadcast %4 : vector<2x1xf32> to vector<2x256xf32>
    %294 = arith.mulf %292, %293 : vector<2x256xf32>
    %295 = arith.fptosi %294 : vector<2x256xf32> to vector<2x256xi32>
    %296 = vector.extract_strided_slice %295 {offsets = [0, 0], sizes = [1, 256], strides = [1, 1]} : vector<2x256xi32> to vector<1x256xi32>
    %297 = vector.extract_strided_slice %295 {offsets = [1, 0], sizes = [1, 256], strides = [1, 1]} : vector<2x256xi32> to vector<1x256xi32>
    %c0_i32_52 = arith.constant 0 : i32
    %298 = vector.broadcast %c0_i32_52 : i32 to vector<1x256xi32>
    %299 = arith.cmpi sge, %296, %298 : vector<1x256xi32>
    %c16_i32_53 = arith.constant 16 : i32
    %300 = vector.broadcast %c16_i32_53 : i32 to vector<1x256xi32>
    %301 = arith.cmpi slt, %296, %300 : vector<1x256xi32>
    %302 = arith.andi %299, %301 : vector<1x256xi1>
    %c0_i32_54 = arith.constant 0 : i32
    %303 = vector.broadcast %c0_i32_54 : i32 to vector<1x256xi32>
    %304 = arith.cmpi sge, %297, %303 : vector<1x256xi32>
    %305 = arith.andi %302, %304 : vector<1x256xi1>
    %c16_i32_55 = arith.constant 16 : i32
    %306 = vector.broadcast %c16_i32_55 : i32 to vector<1x256xi32>
    %307 = arith.cmpi slt, %297, %306 : vector<1x256xi32>
    %308 = arith.andi %305, %307 : vector<1x256xi1>
    %309 = arith.extui %308 : vector<1x256xi1> to vector<1x256xi32>
    %310 = arith.sitofp %309 : vector<1x256xi32> to vector<1x256xf32>
    %311 = vector.broadcast %310 : vector<1x256xf32> to vector<4x256xf32>
    %312 = arith.mulf %290, %311 : vector<4x256xf32>
    %c16_i32_56 = arith.constant 16 : i32
    %313 = vector.broadcast %c16_i32_56 : i32 to vector<1x256xi32>
    %314 = arith.muli %296, %313 : vector<1x256xi32>
    %315 = arith.addi %314, %297 : vector<1x256xi32>
    %316 = vector.broadcast %315 : vector<1x256xi32> to vector<256x256xi32>
    %317 = arith.cmpi eq, %6, %316 : vector<256x256xi32>
    %318 = arith.extui %317 : vector<256x256xi1> to vector<256x256xi32>
    %319 = arith.sitofp %318 : vector<256x256xi32> to vector<256x256xf32>
    %cst_57 = arith.constant dense<0.000000e+00> : vector<4x256xf32>
    %320 = tpu.matmul %312, %319, %cst_57 {dimension_numbers = #tpu.dot_dimension_numbers<[1], [1], [0], [0], [0, 0, 1, 0], [], []>} : vector<4x256xf32>, vector<256x256xf32>, vector<4x256xf32> -> vector<4x256xf32>
    %321 = arith.addf %237, %320 : vector<4x256xf32>
    %322 = vector.extract_strided_slice %0 {offsets = [0, 0], sizes = [3, 1], strides = [1, 1]} : vector<3x3xf32> to vector<3x1xf32>
    %323 = vector.extract_strided_slice %262 {offsets = [0, 0], sizes = [1, 256], strides = [1, 1]} : vector<2x256xf32> to vector<1x256xf32>
    %324 = vector.broadcast %322 : vector<3x1xf32> to vector<3x256xf32>
    %325 = vector.broadcast %323 : vector<1x256xf32> to vector<3x256xf32>
    %326 = arith.mulf %324, %325 : vector<3x256xf32>
    %327 = vector.extract_strided_slice %0 {offsets = [0, 1], sizes = [3, 1], strides = [1, 1]} : vector<3x3xf32> to vector<3x1xf32>
    %328 = vector.extract_strided_slice %262 {offsets = [1, 0], sizes = [1, 256], strides = [1, 1]} : vector<2x256xf32> to vector<1x256xf32>
    %329 = vector.broadcast %327 : vector<3x1xf32> to vector<3x256xf32>
    %330 = vector.broadcast %328 : vector<1x256xf32> to vector<3x256xf32>
    %331 = arith.mulf %329, %330 : vector<3x256xf32>
    %332 = arith.addf %326, %331 : vector<3x256xf32>
    %333 = vector.extract_strided_slice %0 {offsets = [0, 2], sizes = [3, 1], strides = [1, 1]} : vector<3x3xf32> to vector<3x1xf32>
    %334 = vector.broadcast %333 : vector<3x1xf32> to vector<3x256xf32>
    %335 = vector.broadcast %267 : vector<1x256xf32> to vector<3x256xf32>
    %336 = arith.mulf %334, %335 : vector<3x256xf32>
    %337 = arith.addf %332, %336 : vector<3x256xf32>
    %338 = vector.broadcast %1 : vector<3x1xf32> to vector<3x256xf32>
    %339 = arith.addf %337, %338 : vector<3x256xf32>
    %340 = math.absf %339 : vector<3x256xf32>
    %cst_58 = arith.constant 1.000000e+00 : f32
    %341 = vector.broadcast %cst_58 : f32 to vector<3x256xf32>
    %342 = arith.addf %341, %340 : vector<3x256xf32>
    %343 = arith.divf %339, %342 : vector<3x256xf32>
    %344 = vector.extract_strided_slice %343 {offsets = [0, 0], sizes = [2, 256], strides = [1, 1]} : vector<3x256xf32> to vector<2x256xf32>
    %cst_59 = arith.constant 1.500000e+00 : f32
    %345 = vector.broadcast %cst_59 : f32 to vector<2x256xf32>
    %346 = arith.mulf %345, %344 : vector<2x256xf32>
    %347 = vector.extract_strided_slice %343 {offsets = [2, 0], sizes = [1, 256], strides = [1, 1]} : vector<3x256xf32> to vector<1x256xf32>
    %cst_60 = arith.constant 5.000000e-01 : f32
    %348 = vector.broadcast %cst_60 : f32 to vector<1x256xf32>
    %349 = arith.mulf %348, %347 : vector<1x256xf32>
    %cst_61 = arith.constant 5.000000e-01 : f32
    %350 = vector.broadcast %cst_61 : f32 to vector<1x256xf32>
    %351 = arith.addf %350, %349 : vector<1x256xf32>
    %cst_62 = arith.constant 1.500000e+01 : f32
    %352 = vector.broadcast %cst_62 : f32 to vector<1x256xf32>
    %353 = arith.mulf %351, %352 : vector<1x256xf32>
    %354 = math.floor %353 : vector<1x256xf32>
    %355 = math.ceil %353 : vector<1x256xf32>
    %356 = arith.subf %353, %354 : vector<1x256xf32>
    %357 = arith.fptosi %354 : vector<1x256xf32> to vector<1x256xi32>
    %358 = arith.fptosi %355 : vector<1x256xf32> to vector<1x256xi32>
    %359 = vector.broadcast %357 : vector<1x256xi32> to vector<16x256xi32>
    %360 = arith.cmpi eq, %5, %359 : vector<16x256xi32>
    %361 = arith.extui %360 : vector<16x256xi1> to vector<16x256xi32>
    %362 = arith.sitofp %361 : vector<16x256xi32> to vector<16x256xf32>
    %cst_63 = arith.constant 1.000000e+00 : f32
    %363 = vector.broadcast %cst_63 : f32 to vector<1x256xf32>
    %364 = arith.subf %363, %356 : vector<1x256xf32>
    %365 = vector.broadcast %364 : vector<1x256xf32> to vector<16x256xf32>
    %366 = arith.mulf %362, %365 : vector<16x256xf32>
    %367 = vector.broadcast %358 : vector<1x256xi32> to vector<16x256xi32>
    %368 = arith.cmpi eq, %5, %367 : vector<16x256xi32>
    %369 = arith.extui %368 : vector<16x256xi1> to vector<16x256xi32>
    %370 = arith.sitofp %369 : vector<16x256xi32> to vector<16x256xf32>
    %371 = vector.broadcast %356 : vector<1x256xf32> to vector<16x256xf32>
    %372 = arith.mulf %370, %371 : vector<16x256xf32>
    %373 = arith.addf %366, %372 : vector<16x256xf32>
    %cst_64 = arith.constant dense<0.000000e+00> : vector<4x256xf32>
    %374 = tpu.matmul %2, %373, %cst_64 {dimension_numbers = #tpu.dot_dimension_numbers<[1], [0], [0], [1], [0, 0, 1, 1], [], []>} : vector<4x16xf32>, vector<16x256xf32>, vector<4x256xf32> -> vector<4x256xf32>
    %375 = vector.broadcast %3 : vector<2x1xf32> to vector<2x256xf32>
    %376 = arith.subf %346, %375 : vector<2x256xf32>
    %377 = vector.broadcast %4 : vector<2x1xf32> to vector<2x256xf32>
    %378 = arith.mulf %376, %377 : vector<2x256xf32>
    %379 = arith.fptosi %378 : vector<2x256xf32> to vector<2x256xi32>
    %380 = vector.extract_strided_slice %379 {offsets = [0, 0], sizes = [1, 256], strides = [1, 1]} : vector<2x256xi32> to vector<1x256xi32>
    %381 = vector.extract_strided_slice %379 {offsets = [1, 0], sizes = [1, 256], strides = [1, 1]} : vector<2x256xi32> to vector<1x256xi32>
    %c0_i32_65 = arith.constant 0 : i32
    %382 = vector.broadcast %c0_i32_65 : i32 to vector<1x256xi32>
    %383 = arith.cmpi sge, %380, %382 : vector<1x256xi32>
    %c16_i32_66 = arith.constant 16 : i32
    %384 = vector.broadcast %c16_i32_66 : i32 to vector<1x256xi32>
    %385 = arith.cmpi slt, %380, %384 : vector<1x256xi32>
    %386 = arith.andi %383, %385 : vector<1x256xi1>
    %c0_i32_67 = arith.constant 0 : i32
    %387 = vector.broadcast %c0_i32_67 : i32 to vector<1x256xi32>
    %388 = arith.cmpi sge, %381, %387 : vector<1x256xi32>
    %389 = arith.andi %386, %388 : vector<1x256xi1>
    %c16_i32_68 = arith.constant 16 : i32
    %390 = vector.broadcast %c16_i32_68 : i32 to vector<1x256xi32>
    %391 = arith.cmpi slt, %381, %390 : vector<1x256xi32>
    %392 = arith.andi %389, %391 : vector<1x256xi1>
    %393 = arith.extui %392 : vector<1x256xi1> to vector<1x256xi32>
    %394 = arith.sitofp %393 : vector<1x256xi32> to vector<1x256xf32>
    %395 = vector.broadcast %394 : vector<1x256xf32> to vector<4x256xf32>
    %396 = arith.mulf %374, %395 : vector<4x256xf32>
    %c16_i32_69 = arith.constant 16 : i32
    %397 = vector.broadcast %c16_i32_69 : i32 to vector<1x256xi32>
    %398 = arith.muli %380, %397 : vector<1x256xi32>
    %399 = arith.addi %398, %381 : vector<1x256xi32>
    %400 = vector.broadcast %399 : vector<1x256xi32> to vector<256x256xi32>
    %401 = arith.cmpi eq, %6, %400 : vector<256x256xi32>
    %402 = arith.extui %401 : vector<256x256xi1> to vector<256x256xi32>
    %403 = arith.sitofp %402 : vector<256x256xi32> to vector<256x256xf32>
    %cst_70 = arith.constant dense<0.000000e+00> : vector<4x256xf32>
    %404 = tpu.matmul %396, %403, %cst_70 {dimension_numbers = #tpu.dot_dimension_numbers<[1], [1], [0], [0], [0, 0, 1, 0], [], []>} : vector<4x256xf32>, vector<256x256xf32>, vector<4x256xf32> -> vector<4x256xf32>
    %405 = arith.addf %321, %404 : vector<4x256xf32>
    %c0_71 = arith.constant 0 : index
    %c0_72 = arith.constant 0 : index
    %406 = vector.load %arg8[%c0_71, %c0_72] : memref<4x256xf32, #tpu.memory_space<vmem>>, vector<4x256xf32>
    tpu.vector_store %arg8[%c0_71, %c0_72], %405 {strides = array<i32>} : memref<4x256xf32, #tpu.memory_space<vmem>>, vector<4x256xf32>,
    return
  }
  func.func @transform_0(%arg0: i32) -> (i32, i32) {
    %c0_i32 = arith.constant 0 : i32
    %c0_i32_0 = arith.constant 0 : i32
    %c0_i32_1 = arith.constant 0 : i32
    return %c0_i32, %c0_i32_0 : i32, i32
  }
  func.func @transform_1(%arg0: i32) -> (i32, i32) {
    %c0_i32 = arith.constant 0 : i32
    %c0_i32_0 = arith.constant 0 : i32
    %c0_i32_1 = arith.constant 0 : i32
    return %c0_i32, %c0_i32_0 : i32, i32
  }
  func.func @transform_2(%arg0: i32) -> (i32, i32) {
    %c0_i32 = arith.constant 0 : i32
    %c0_i32_0 = arith.constant 0 : i32
    %c0_i32_1 = arith.constant 0 : i32
    return %c0_i32, %c0_i32_0 : i32, i32
  }
  func.func @transform_3(%arg0: i32) -> (i32, i32) {
    %c0_i32 = arith.constant 0 : i32
    %c0_i32_0 = arith.constant 0 : i32
    %c0_i32_1 = arith.constant 0 : i32
    return %c0_i32, %c0_i32_0 : i32, i32
  }
  func.func @transform_4(%arg0: i32) -> (i32, i32) {
    %c0_i32 = arith.constant 0 : i32
    %c0_i32_0 = arith.constant 0 : i32
    %c0_i32_1 = arith.constant 0 : i32
    return %c0_i32, %c0_i32_0 : i32, i32
  }
  func.func @transform_5(%arg0: i32) -> (i32, i32) {
    %c0_i32 = arith.constant 0 : i32
    %c0_i32_0 = arith.constant 0 : i32
    %c0_i32_1 = arith.constant 0 : i32
    return %c0_i32, %c0_i32_0 : i32, i32
  }
  func.func @transform_6(%arg0: i32) -> (i32, i32) {
    %c0_i32 = arith.constant 0 : i32
    %c0_i32_0 = arith.constant 0 : i32
    %c0_i32_1 = arith.constant 0 : i32
    return %c0_i32, %c0_i32_0 : i32, i32
  }
  func.func @transform_7(%arg0: i32) -> (i32, i32) {
    %c0_i32 = arith.constant 0 : i32
    %c0_i32_0 = arith.constant 0 : i32
    %c0_i32_1 = arith.constant 0 : i32
    return %c0_i32, %c0_i32_0 : i32, i32
  }
}

</mosaic_0001>

<llo_original>
// kernel: tpu_custom_call.1
$region0: #{tpu_custom_call.1}
  #allocation0 [shape = 'u32[]', space=smem, size = 0x4, offset = 0x4, fixed_abs, tag = 'smem constant byte address 0x4 - core index']
  #allocation1 [shape = 'u32[144,128]{1,0:T(1,128)}', space=vmem, size = 0x12000, scoped, tag = 'internal scratch']
  %s0 = inlined_call_operand.vmem [shape: f32[2,256], index: 0, kind: input, shape index: {}]
  %s1 = inlined_call_operand.vmem [shape: f32[1,256], index: 1, kind: input, shape index: {}]
  %s2 = inlined_call_operand.vmem [shape: f32[3,3], index: 2, kind: input, shape index: {}]
  %s3 = inlined_call_operand.vmem [shape: f32[3,1], index: 3, kind: input, shape index: {}]
  %s4 = inlined_call_operand.vmem [shape: f32[4,16], index: 4, kind: input, shape index: {}]
  %s5 = inlined_call_operand.vmem [shape: f32[2,1], index: 5, kind: input, shape index: {}]
  %s6 = inlined_call_operand.vmem [shape: f32[2,1], index: 6, kind: input, shape index: {}]
  %s7 = inlined_call_operand.hbm [shape: f32[4,256], index: 7, kind: output, shape index: {}]
  %s8 = sld [smem:[#allocation0]]
  $region38: #{tpu_custom_call.1} parent=0
    _
  %s10 = ssub.s32 1, %s8
  %s11 = scalar_select 0, %s10, %s8
  $region1: #{tpu_custom_call.1} parent=0
    #allocation2 [shape = 'u8[4096]{0}', space=vmem, size = 0x1000, scoped, tag = 'output window, operand 0, single buffered']
    #allocation3 [shape = 's32[1]{0}', space=sflag, size = 0x4, scoped, tag = 'scoped memory for tpu_custom_call.1']
    %12 = vsyncpa [#allocation3], 0
    // Predicated region
    $region2: #{tpu_custom_call.1} parent=1 // pred_check
      _
    $region3: #{tpu_custom_call.1} parent=1 // pred_check_branch
      %14 = sbr.rel (0) target = $region5
    $region4: #{tpu_custom_call.1} parent=1 // pred_region
      _
    $region5: #{tpu_custom_call.1} parent=1 // pred_fallthru
      _
    // Predicated region
    $region6: #{tpu_custom_call.1} parent=1 // pred_check
      _
    $region7: #{tpu_custom_call.1} parent=1 // pred_check_branch
      %16 = sbr.rel (0) target = $region9
    $region8: #{tpu_custom_call.1} parent=1 // pred_region
      _
    $region9: #{tpu_custom_call.1} parent=1 // pred_fallthru
      _
    // Predicated region
    $region10: #{tpu_custom_call.1} parent=1 // pred_check
      _
    $region11: #{tpu_custom_call.1} parent=1 // pred_check_branch
      %18 = sbr.rel (0) target = $region13
    $region12: #{tpu_custom_call.1} parent=1 // pred_region
      _
    $region13: #{tpu_custom_call.1} parent=1 // pred_fallthru
      _
    // Predicated region
    $region14: #{tpu_custom_call.1} parent=1 // pred_check
      _
    $region15: #{tpu_custom_call.1} parent=1 // pred_check_branch
      %20 = sbr.rel (0) target = $region17
    $region16: #{tpu_custom_call.1} parent=1 // pred_region
      _
    $region17: #{tpu_custom_call.1} parent=1 // pred_fallthru
      _
    // Predicated region
    $region18: #{tpu_custom_call.1} parent=1 // pred_check
      _
    $region19: #{tpu_custom_call.1} parent=1 // pred_check_branch
      %22 = sbr.rel (0) target = $region21
    $region20: #{tpu_custom_call.1} parent=1 // pred_region
      _
    $region21: #{tpu_custom_call.1} parent=1 // pred_fallthru
      _
    // Predicated region
    $region22: #{tpu_custom_call.1} parent=1 // pred_check
      _
    $region23: #{tpu_custom_call.1} parent=1 // pred_check_branch
      %24 = sbr.rel (0) target = $region25
    $region24: #{tpu_custom_call.1} parent=1 // pred_region
      _
    $region25: #{tpu_custom_call.1} parent=1 // pred_fallthru
      _
    // Predicated region
    $region26: #{tpu_custom_call.1} parent=1 // pred_check
      _
    $region27: #{tpu_custom_call.1} parent=1 // pred_check_branch
      %26 = sbr.rel (0) target = $region29
    $region28: #{tpu_custom_call.1} parent=1 // pred_region
      _
    $region29: #{tpu_custom_call.1} parent=1 // pred_fallthru
      _
    %v27 = vld [vmem:[%s2] sm:$0x7]
    %v28 = vld [vmem:[%s3] sm:$0x7]
    %v29 = vld [vmem:[%s4] sm:$0xf]
    %v30 = vld [vmem:[%s5] sm:$0x3]
    %v31 = vld [vmem:[%s6] sm:$0x3]
    %v32 = vlaneseq
    %v33 = vshrl.u32 %v32, 7
    %v34 = vadd.s32 %v33, 8
    %v35 = vadd.s32 %v33, 16
    %v36 = vadd.s32 %v33, 24
    %v37 = vadd.s32 %v33, 32
    %v38 = vadd.s32 %v33, 40
    %v39 = vadd.s32 %v33, 48
    %v40 = vadd.s32 %v33, 56
    %v41 = vadd.s32 %v33, 64
    %v42 = vadd.s32 %v33, 72
    %v43 = vadd.s32 %v33, 80
    %v44 = vadd.s32 %v33, 88
    %v45 = vadd.s32 %v33, 96
    %v46 = vadd.s32 %v33, 104
    %v47 = vadd.s32 %v33, 112
    %v48 = vadd.s32 %v33, 120
    %v49 = vadd.s32 %v33, 128
    %v50 = vadd.s32 %v33, 136
    %v51 = vadd.s32 %v33, 144
    %v52 = vadd.s32 %v33, 152
    %v53 = vadd.s32 %v33, 160
    %v54 = vadd.s32 %v33, 168
    %v55 = vadd.s32 %v33, 176
    %v56 = vadd.s32 %v33, 184
    %v57 = vadd.s32 %v33, 192
    %v58 = vadd.s32 %v33, 200
    %v59 = vadd.s32 %v33, 208
    %v60 = vadd.s32 %v33, 216
    %v61 = vadd.s32 %v33, 224
    %v62 = vadd.s32 %v33, 232
    %v63 = vadd.s32 %v33, 240
    %v64 = vadd.s32 %v33, 248
    %v65 = vld [vmem:[%s0] sm:$0xf]
    %v66 = vld [vmem:[%s1] sm:$0x3]
    %68 = vset.pattern.permute.xlu0 0
    %69 = vperm.xlu0 %68, %v27
    %v70 = vpop.permute.xlu0 %69
    %v73 = vlaneseq
    %v74 = vshrl.u32 %v73, 7
    %v75 = vsub.s32 0, %v74
    %v76 = vrot.slane %v65, %v75
    %v77 = vlaneseq
    %v78 = vshrl.u32 %v77, 7
    %v79 = vsub.s32 2, %v78
    %v80 = vrot.slane %v65, %v79
    %v83 = vlaneseq
    %v84 = vshrl.u32 %v83, 7
    %v85 = vsub.s32 0, %v84
    %v86 = vrot.slane %v76, %v85
    %v87 = vlaneseq
    %v88 = vshrl.u32 %v87, 7
    %v89 = vsub.s32 0, %v88
    %v90 = vrot.slane %v80, %v89
    %v91 = vmul.f32 %v70, %v86
    %v92 = vmul.f32 %v70, %v90
    %93 = vset.pattern.permute.xlu0 1
    %94 = vperm.xlu0 %93, %v27
    %v95 = vpop.permute.xlu0 %94
    %v97 = vlaneseq
    %v98 = vshrl.u32 %v97, 7
    %v99 = vsub.s32 1, %v98
    %v100 = vrot.slane %v65, %v99
    %v101 = vlaneseq
    %v102 = vshrl.u32 %v101, 7
    %v103 = vsub.s32 3, %v102
    %v104 = vrot.slane %v65, %v103
    %v107 = vlaneseq
    %v108 = vshrl.u32 %v107, 7
    %v109 = vsub.s32 1, %v108
    %v110 = vrot.slane %v100, %v109
    %v111 = vlaneseq
    %v112 = vshrl.u32 %v111, 7
    %v113 = vsub.s32 1, %v112
    %v114 = vrot.slane %v104, %v113
    %v115 = vmul.f32 %v95, %v110
    %v116 = vmul.f32 %v95, %v114
    %v117 = vadd.f32 %v91, %v115
    %v118 = vadd.f32 %v92, %v116
    %119 = vset.pattern.permute.xlu0 2
    %120 = vperm.xlu0 %119, %v27
    %v121 = vpop.permute.xlu0 %120
    %v124 = vlaneseq
    %v125 = vshrl.u32 %v124, 7
    %v126 = vsub.s32 0, %v125
    %v127 = vrot.slane %v66, %v126
    %v128 = vlaneseq
    %v129 = vshrl.u32 %v128, 7
    %v130 = vsub.s32 1, %v129
    %v131 = vrot.slane %v66, %v130
    %v134 = vmul.f32 %v121, %v127
    %v135 = vmul.f32 %v121, %v131
    %v136 = vadd.f32 %v117, %v134
    %v137 = vadd.f32 %v118, %v135
    %139 = vset.pattern.permute.xlu0 0
    %140 = vperm.xlu0 %139, %v28
    %v141 = vpop.permute.xlu0 %140
    %v143 = vadd.f32 %v136, %v141
    %v144 = vadd.f32 %v137, %v141
    %v145 = vand.u32 2147483647, %v143
    %v146 = vand.u32 2147483647, %v144
    %v147 = vadd.f32 %v145, 1.0
    %v148 = vadd.f32 %v146, 1.0
    %v149 = vrcp.pop %v147
    %v150 = vmul.f32 %v143, %v149
    %v151 = vrcp.pop %v148
    %v152 = vmul.f32 %v144, %v151
    %v153 = vmul.f32 %v150, 1.5
    %v154 = vmul.f32 %v152, 1.5
    %v155 = vmul.f32 %v150, 0.5
    %v156 = vmul.f32 %v152, 0.5
    %v157 = vadd.f32 %v155, 0.5
    %v158 = vadd.f32 %v156, 0.5
    %v159 = vlaneseq
    %v160 = vshrl.u32 %v159, 7
    %v161 = vsub.s32 0, %v160
    %v162 = vrot.slane %v153, %v161
    %v163 = vlaneseq
    %v164 = vshrl.u32 %v163, 7
    %v165 = vsub.s32 0, %v164
    %v166 = vrot.slane %v154, %v165
    %v167 = vmul.f32 %v70, %v162
    %v168 = vmul.f32 %v70, %v166
    %v169 = vlaneseq
    %v170 = vshrl.u32 %v169, 7
    %v171 = vsub.s32 1, %v170
    %v172 = vrot.slane %v153, %v171
    %v173 = vlaneseq
    %v174 = vshrl.u32 %v173, 7
    %v175 = vsub.s32 1, %v174
    %v176 = vrot.slane %v154, %v175
    %v177 = vmul.f32 %v95, %v172
    %v178 = vmul.f32 %v95, %v176
    %v179 = vadd.f32 %v167, %v177
    %v180 = vadd.f32 %v168, %v178
    %v181 = vlaneseq
    %v182 = vshrl.u32 %v181, 7
    %v183 = vsub.s32 2, %v182
    %v184 = vrot.slane %v157, %v183
    %v185 = vlaneseq
    %v186 = vshrl.u32 %v185, 7
    %v187 = vsub.s32 2, %v186
    %v188 = vrot.slane %v158, %v187
    %v189 = vmul.f32 %v121, %v184
    %v190 = vmul.f32 %v121, %v188
    %v191 = vadd.f32 %v179, %v189
    %v192 = vadd.f32 %v180, %v190
    %v193 = vadd.f32 %v191, %v141
    %v194 = vadd.f32 %v192, %v141
    %v195 = vand.u32 2147483647, %v193
    %v196 = vand.u32 2147483647, %v194
    %v197 = vadd.f32 %v195, 1.0
    %v198 = vadd.f32 %v196, 1.0
    %v199 = vrcp.pop %v197
    %v200 = vmul.f32 %v193, %v199
    %v201 = vrcp.pop %v198
    %v202 = vmul.f32 %v194, %v201
    %v203 = vmul.f32 %v200, 1.5
    %v204 = vmul.f32 %v202, 1.5
    %v205 = vmul.f32 %v200, 0.5
    %v206 = vmul.f32 %v202, 0.5
    %v207 = vadd.f32 %v205, 0.5
    %v208 = vadd.f32 %v206, 0.5
    %v209 = vlaneseq
    %v210 = vshrl.u32 %v209, 7
    %v211 = vsub.s32 0, %v210
    %v212 = vrot.slane %v203, %v211
    %v213 = vlaneseq
    %v214 = vshrl.u32 %v213, 7
    %v215 = vsub.s32 0, %v214
    %v216 = vrot.slane %v204, %v215
    %v217 = vmul.f32 %v70, %v212
    %v218 = vmul.f32 %v70, %v216
    %v219 = vlaneseq
    %v220 = vshrl.u32 %v219, 7
    %v221 = vsub.s32 1, %v220
    %v222 = vrot.slane %v203, %v221
    %v223 = vlaneseq
    %v224 = vshrl.u32 %v223, 7
    %v225 = vsub.s32 1, %v224
    %v226 = vrot.slane %v204, %v225
    %v227 = vmul.f32 %v95, %v222
    %v228 = vmul.f32 %v95, %v226
    %v229 = vadd.f32 %v217, %v227
    %v230 = vadd.f32 %v218, %v228
    %v231 = vlaneseq
    %v232 = vshrl.u32 %v231, 7
    %v233 = vsub.s32 2, %v232
    %v234 = vrot.slane %v207, %v233
    %v235 = vlaneseq
    %v236 = vshrl.u32 %v235, 7
    %v237 = vsub.s32 2, %v236
    %v238 = vrot.slane %v208, %v237
    %v239 = vmul.f32 %v121, %v234
    %v240 = vmul.f32 %v121, %v238
    %v241 = vadd.f32 %v229, %v239
    %v242 = vadd.f32 %v230, %v240
    %v243 = vadd.f32 %v241, %v141
    %v244 = vadd.f32 %v242, %v141
    %v245 = vand.u32 2147483647, %v243
    %v246 = vand.u32 2147483647, %v244
    %v247 = vadd.f32 %v245, 1.0
    %v248 = vadd.f32 %v246, 1.0
    %v249 = vrcp.pop %v247
    %v250 = vmul.f32 %v243, %v249
    %v251 = vrcp.pop %v248
    %v252 = vmul.f32 %v244, %v251
    %v253 = vmul.f32 %v250, 1.5
    %v254 = vmul.f32 %v252, 1.5
    %v255 = vmul.f32 %v250, 0.5
    %v256 = vmul.f32 %v252, 0.5
    %v257 = vadd.f32 %v255, 0.5
    %v258 = vadd.f32 %v256, 0.5
    %v259 = vmul.f32 %v257, 15.0
    %v260 = vmul.f32 %v258, 15.0
    %v261 = vfloor.f32 %v259
    %v262 = vfloor.f32 %v260
    %v263 = vceil.f32 %v259
    %v264 = vceil.f32 %v260
    %v265 = vsub.f32 %v259, %v261
    %v266 = vsub.f32 %v260, %v262
    %v267 = vcvt.f32.s32.to.zero.pseudo %v261
    %v268 = vcvt.f32.s32.to.zero.pseudo %v262
    %v269 = vcvt.f32.s32.to.zero.pseudo %v263
    %v270 = vcvt.f32.s32.to.zero.pseudo %v264
    %v271 = vlaneseq
    %v272 = vshrl.u32 %v271, 7
    %v273 = vsub.s32 2, %v272
    %v274 = vrot.slane %v267, %v273
    %v275 = vlaneseq
    %v276 = vshrl.u32 %v275, 7
    %v277 = vsub.s32 2, %v276
    %v278 = vrot.slane %v268, %v277
    %vm279 = vcmp.eq.s32.totalorder %v33, %v274
    %vm280 = vcmp.eq.s32.totalorder %v33, %v278
    %vm281 = vcmp.eq.s32.totalorder %v34, %v274
    %vm282 = vcmp.eq.s32.totalorder %v34, %v278
    %v283 = vsel %vm279, 1, 0
    %v284 = vsel %vm280, 1, 0
    %v285 = vsel %vm281, 1, 0
    %v286 = vsel %vm282, 1, 0
    %v287 = vcvt.s32.f32 %v283
    %v288 = vcvt.s32.f32 %v284
    %v289 = vcvt.s32.f32 %v285
    %v290 = vcvt.s32.f32 %v286
    %v291 = vsub.f32 1.0, %v265
    %v292 = vsub.f32 1.0, %v266
    %v293 = vlaneseq
    %v294 = vshrl.u32 %v293, 7
    %v295 = vsub.s32 2, %v294
    %v296 = vrot.slane %v291, %v295
    %v297 = vlaneseq
    %v298 = vshrl.u32 %v297, 7
    %v299 = vsub.s32 2, %v298
    %v300 = vrot.slane %v292, %v299
    %v301 = vmul.f32 %v287, %v296
    %v302 = vmul.f32 %v288, %v300
    %v303 = vmul.f32 %v289, %v296
    %v304 = vmul.f32 %v290, %v300
    %v305 = vlaneseq
    %v306 = vshrl.u32 %v305, 7
    %v307 = vsub.s32 2, %v306
    %v308 = vrot.slane %v269, %v307
    %v309 = vlaneseq
    %v310 = vshrl.u32 %v309, 7
    %v311 = vsub.s32 2, %v310
    %v312 = vrot.slane %v270, %v311
    %vm313 = vcmp.eq.s32.totalorder %v33, %v308
    %vm314 = vcmp.eq.s32.totalorder %v33, %v312
    %vm315 = vcmp.eq.s32.totalorder %v34, %v308
    %vm316 = vcmp.eq.s32.totalorder %v34, %v312
    %v317 = vsel %vm313, 1, 0
    %v318 = vsel %vm314, 1, 0
    %v319 = vsel %vm315, 1, 0
    %v320 = vsel %vm316, 1, 0
    %v321 = vcvt.s32.f32 %v317
    %v322 = vcvt.s32.f32 %v318
    %v323 = vcvt.s32.f32 %v319
    %v324 = vcvt.s32.f32 %v320
    %v325 = vlaneseq
    %v326 = vshrl.u32 %v325, 7
    %v327 = vsub.s32 2, %v326
    %v328 = vrot.slane %v265, %v327
    %v329 = vlaneseq
    %v330 = vshrl.u32 %v329, 7
    %v331 = vsub.s32 2, %v330
    %v332 = vrot.slane %v266, %v331
    %v333 = vmul.f32 %v321, %v328
    %v334 = vmul.f32 %v322, %v332
    %v335 = vmul.f32 %v323, %v328
    %v336 = vmul.f32 %v324, %v332
    %v337 = vadd.f32 %v301, %v333
    %v338 = vadd.f32 %v302, %v334
    %v339 = vadd.f32 %v303, %v335
    %v340 = vadd.f32 %v304, %v336
    %vm341 = vcmask 130048
    %v343 = vsel %vm341, %v29, 0
    %345 = vmatprep.subr.mxu0 %v338
    %346 = vmatpush1.msra.mxu0 %v337
    %347 = vmatprep.subr.mxu0 %v340
    %348 = vmatpush1.msra.mxu0 %v339
    %349 = vmatprep.subr.mxu0 0.0
    %350 = vmatpush1.msra.mxu0 0.0
    %351 = vmatprep.subr.mxu0 0.0
    %352 = vmatpush1.msra.mxu0 0.0
    %353 = vmatprep.subr.mxu0 0.0
    %354 = vmatpush1.msra.mxu0 0.0
    %355 = vmatprep.subr.mxu0 0.0
    %356 = vmatpush1.msra.mxu0 0.0
    %357 = vmatprep.subr.mxu0 0.0
    %358 = vmatpush1.msra.mxu0 0.0
    %359 = vmatprep.subr.mxu0 0.0
    %360 = vmatpush1.msra.mxu0 0.0
    %361 = vmatprep.subr.mxu0 0.0
    %362 = vmatpush1.msra.mxu0 0.0
    %363 = vmatprep.subr.mxu0 0.0
    %364 = vmatpush1.msra.mxu0 0.0
    %365 = vmatprep.subr.mxu0 0.0
    %366 = vmatpush1.msra.mxu0 0.0
    %367 = vmatprep.subr.mxu0 0.0
    %368 = vmatpush1.msra.mxu0 0.0
    %369 = vmatprep.subr.mxu0 0.0
    %370 = vmatpush1.msra.mxu0 0.0
    %371 = vmatprep.subr.mxu0 0.0
    %372 = vmatpush1.msra.mxu0 0.0
    %373 = vmatprep.subr.mxu0 0.0
    %374 = vmatpush1.msra.mxu0 0.0
    %375 = vmatprep.subr.mxu0 0.0
    %376 = vmatpush1.msra.mxu0 0.0
    %377 = vmatprep.subr.mxu0 0.0
    %378 = vmatpush1.msra.mxu0 0.0
    %379 = vmatprep.subr.mxu0 0.0
    %380 = vmatpush1.msra.mxu0 0.0
    %381 = vmatprep.subr.mxu0 0.0
    %382 = vmatpush1.msra.mxu0 0.0
    %383 = vmatprep.subr.mxu0 0.0
    %384 = vmatpush1.msra.mxu0 0.0
    %385 = vmatprep.subr.mxu0 0.0
    %386 = vmatpush1.msra.mxu0 0.0
    %387 = vmatprep.subr.mxu0 0.0
    %388 = vmatpush1.msra.mxu0 0.0
    %389 = vmatprep.subr.mxu0 0.0
    %390 = vmatpush1.msra.mxu0 0.0
    %391 = vmatprep.subr.mxu0 0.0
    %392 = vmatpush1.msra.mxu0 0.0
    %393 = vmatprep.subr.mxu0 0.0
    %394 = vmatpush1.msra.mxu0 0.0
    %395 = vmatprep.subr.mxu0 0.0
    %396 = vmatpush1.msra.mxu0 0.0
    %397 = vmatprep.subr.mxu0 0.0
    %398 = vmatpush1.msra.mxu0 0.0
    %399 = vmatprep.subr.mxu0 0.0
    %400 = vmatpush1.msra.mxu0 0.0
    %401 = vmatprep.subr.mxu0 0.0
    %402 = vmatpush1.msra.mxu0 0.0
    %403 = vmatprep.subr.mxu0 0.0
    %404 = vmatpush1.msra.mxu0 0.0
    %405 = vmatprep.subr.mxu0 0.0
    %406 = vmatpush1.msra.mxu0 0.0
    %407 = vmatprep.subr.mxu0 0.0
    %408 = vmatpush1.msra.mxu0 0.0
    %409 = vmatprep.mubr.f32.mxu0 0.0
    %410 = vmatmul.mubr.f32.gmra.mrb[0].mxu0 %v343
    %v411 = vpop.f32.mrb[0].mxu0
    %v412 = vadd.f32 0.0, %v411
    %v413 = vpop.f32.mrb[0].mxu0
    %v414 = vadd.f32 0.0, %v413
    %415 = vdwg.mxu0
    %417 = vset.pattern.permute.xlu0 0
    %418 = vperm.xlu0 %417, %v30
    %v419 = vpop.permute.xlu0 %418
    %v421 = vsub.f32 %v253, %v419
    %v422 = vsub.f32 %v254, %v419
    %424 = vset.pattern.permute.xlu0 0
    %425 = vperm.xlu0 %424, %v31
    %v426 = vpop.permute.xlu0 %425
    %v428 = vmul.f32 %v421, %v426
    %v429 = vmul.f32 %v422, %v426
    %v430 = vcvt.f32.s32.to.zero.pseudo %v428
    %v431 = vcvt.f32.s32.to.zero.pseudo %v429
    %vm432 = vcmp.ge.s32.totalorder %v430, 0
    %vm433 = vcmp.ge.s32.totalorder %v431, 0
    %vm434 = vcmp.lt.s32.totalorder %v430, 16
    %vm435 = vcmp.lt.s32.totalorder %v431, 16
    %vm436 = vmand %vm432, %vm434
    %vm437 = vmand %vm433, %vm435
    %v438 = vsel %vm432, 1, 0
    %v439 = vsel %vm433, 1, 0
    %v440 = vrot.slane %v438, 1
    %v441 = vrot.slane %v439, 1
    %vm442 = vcmp.ne.s32.totalorder %v440, 0
    %vm443 = vcmp.ne.s32.totalorder %v441, 0
    %vm444 = vmand %vm436, %vm442
    %vm445 = vmand %vm437, %vm443
    %v446 = vsel %vm434, 1, 0
    %v447 = vsel %vm435, 1, 0
    %v448 = vrot.slane %v446, 1
    %v449 = vrot.slane %v447, 1
    %vm450 = vcmp.ne.s32.totalorder %v448, 0
    %vm451 = vcmp.ne.s32.totalorder %v449, 0
    %vm452 = vmand %vm444, %vm450
    %vm453 = vmand %vm445, %vm451
    %v454 = vsel %vm452, 1, 0
    %v455 = vsel %vm453, 1, 0
    %v456 = vcvt.s32.f32 %v454
    %v457 = vcvt.s32.f32 %v455
    %v458 = vlaneseq
    %v459 = vshrl.u32 %v458, 7
    %v460 = vsub.s32 0, %v459
    %v461 = vrot.slane %v456, %v460
    %v462 = vlaneseq
    %v463 = vshrl.u32 %v462, 7
    %v464 = vsub.s32 0, %v463
    %v465 = vrot.slane %v457, %v464
    %v466 = vmul.f32 %v412, %v461
    %v467 = vmul.f32 %v414, %v465
    %v468 = vmul.u32 %v430, 16
    %v469 = vmul.u32 %v431, 16
    %v470 = vrot.slane %v430, 1
    %v471 = vrot.slane %v431, 1
    %v472 = vadd.s32 %v468, %v470
    %v473 = vadd.s32 %v469, %v471
    %v474 = vlaneseq
    %v475 = vshrl.u32 %v474, 7
    %v476 = vsub.s32 0, %v475
    %v477 = vrot.slane %v472, %v476
    %v478 = vlaneseq
    %v479 = vshrl.u32 %v478, 7
    %v480 = vsub.s32 0, %v479
    %v481 = vrot.slane %v473, %v480
    %vm482 = vcmp.eq.s32.totalorder %v33, %v477
    %vm483 = vcmp.eq.s32.totalorder %v33, %v481
    %vm484 = vcmp.eq.s32.totalorder %v34, %v477
    %vm485 = vcmp.eq.s32.totalorder %v34, %v481
    %vm486 = vcmp.eq.s32.totalorder %v35, %v477
    %vm487 = vcmp.eq.s32.totalorder %v35, %v481
    %vm488 = vcmp.eq.s32.totalorder %v36, %v477
    %vm489 = vcmp.eq.s32.totalorder %v36, %v481
    %vm490 = vcmp.eq.s32.totalorder %v37, %v477
    %vm491 = vcmp.eq.s32.totalorder %v37, %v481
    %vm492 = vcmp.eq.s32.totalorder %v38, %v477
    %vm493 = vcmp.eq.s32.totalorder %v38, %v481
    %vm494 = vcmp.eq.s32.totalorder %v39, %v477
    %vm495 = vcmp.eq.s32.totalorder %v39, %v481
    %vm496 = vcmp.eq.s32.totalorder %v40, %v477
    %vm497 = vcmp.eq.s32.totalorder %v40, %v481
    %vm498 = vcmp.eq.s32.totalorder %v41, %v477
    %vm499 = vcmp.eq.s32.totalorder %v41, %v481
    %vm500 = vcmp.eq.s32.totalorder %v42, %v477
    %vm501 = vcmp.eq.s32.totalorder %v42, %v481
    %vm502 = vcmp.eq.s32.totalorder %v43, %v477
    %vm503 = vcmp.eq.s32.totalorder %v43, %v481
    %vm504 = vcmp.eq.s32.totalorder %v44, %v477
    %vm505 = vcmp.eq.s32.totalorder %v44, %v481
    %vm506 = vcmp.eq.s32.totalorder %v45, %v477
    %vm507 = vcmp.eq.s32.totalorder %v45, %v481
    %vm508 = vcmp.eq.s32.totalorder %v46, %v477
    %vm509 = vcmp.eq.s32.totalorder %v46, %v481
    %vm510 = vcmp.eq.s32.totalorder %v47, %v477
    %vm511 = vcmp.eq.s32.totalorder %v47, %v481
    %vm512 = vcmp.eq.s32.totalorder %v48, %v477
    %vm513 = vcmp.eq.s32.totalorder %v48, %v481
    %vm514 = vcmp.eq.s32.totalorder %v49, %v477
    %vm515 = vcmp.eq.s32.totalorder %v49, %v481
    %vm516 = vcmp.eq.s32.totalorder %v50, %v477
    %vm517 = vcmp.eq.s32.totalorder %v50, %v481
    %vm518 = vcmp.eq.s32.totalorder %v51, %v477
    %vm519 = vcmp.eq.s32.totalorder %v51, %v481
    %vm520 = vcmp.eq.s32.totalorder %v52, %v477
    %vm521 = vcmp.eq.s32.totalorder %v52, %v481
    %vm522 = vcmp.eq.s32.totalorder %v53, %v477
    %vm523 = vcmp.eq.s32.totalorder %v53, %v481
    %vm524 = vcmp.eq.s32.totalorder %v54, %v477
    %vm525 = vcmp.eq.s32.totalorder %v54, %v481
    %vm526 = vcmp.eq.s32.totalorder %v55, %v477
    %vm527 = vcmp.eq.s32.totalorder %v55, %v481
    %vm528 = vcmp.eq.s32.totalorder %v56, %v477
    %vm529 = vcmp.eq.s32.totalorder %v56, %v481
    %vm530 = vcmp.eq.s32.totalorder %v57, %v477
    %vm531 = vcmp.eq.s32.totalorder %v57, %v481
    %vm532 = vcmp.eq.s32.totalorder %v58, %v477
    %vm533 = vcmp.eq.s32.totalorder %v58, %v481
    %vm534 = vcmp.eq.s32.totalorder %v59, %v477
    %vm535 = vcmp.eq.s32.totalorder %v59, %v481
    %vm536 = vcmp.eq.s32.totalorder %v60, %v477
    %vm537 = vcmp.eq.s32.totalorder %v60, %v481
    %vm538 = vcmp.eq.s32.totalorder %v61, %v477
    %vm539 = vcmp.eq.s32.totalorder %v61, %v481
    %vm540 = vcmp.eq.s32.totalorder %v62, %v477
    %vm541 = vcmp.eq.s32.totalorder %v62, %v481
    %vm542 = vcmp.eq.s32.totalorder %v63, %v477
    %vm543 = vcmp.eq.s32.totalorder %v63, %v481
    %vm544 = vcmp.eq.s32.totalorder %v64, %v477
    %vm545 = vcmp.eq.s32.totalorder %v64, %v481
    %v546 = vsel %vm482, 1, 0
    %v547 = vsel %vm483, 1, 0
    %v548 = vsel %vm484, 1, 0
    %v549 = vsel %vm485, 1, 0
    %v550 = vsel %vm486, 1, 0
    %v551 = vsel %vm487, 1, 0
    %v552 = vsel %vm488, 1, 0
    %v553 = vsel %vm489, 1, 0
    %v554 = vsel %vm490, 1, 0
    %v555 = vsel %vm491, 1, 0
    %v556 = vsel %vm492, 1, 0
    %v557 = vsel %vm493, 1, 0
    %v558 = vsel %vm494, 1, 0
    %v559 = vsel %vm495, 1, 0
    %v560 = vsel %vm496, 1, 0
    %v561 = vsel %vm497, 1, 0
    %v562 = vsel %vm498, 1, 0
    %v563 = vsel %vm499, 1, 0
    %v564 = vsel %vm500, 1, 0
    %v565 = vsel %vm501, 1, 0
    %v566 = vsel %vm502, 1, 0
    %v567 = vsel %vm503, 1, 0
    %v568 = vsel %vm504, 1, 0
    %v569 = vsel %vm505, 1, 0
    %v570 = vsel %vm506, 1, 0
    %v571 = vsel %vm507, 1, 0
    %v572 = vsel %vm508, 1, 0
    %v573 = vsel %vm509, 1, 0
    %v574 = vsel %vm510, 1, 0
    %v575 = vsel %vm511, 1, 0
    %v576 = vsel %vm512, 1, 0
    %v577 = vsel %vm513, 1, 0
    %v578 = vsel %vm514, 1, 0
    %v579 = vsel %vm515, 1, 0
    %v580 = vsel %vm516, 1, 0
    %v581 = vsel %vm517, 1, 0
    %v582 = vsel %vm518, 1, 0
    %v583 = vsel %vm519, 1, 0
    %v584 = vsel %vm520, 1, 0
    %v585 = vsel %vm521, 1, 0
    %v586 = vsel %vm522, 1, 0
    %v587 = vsel %vm523, 1, 0
    %v588 = vsel %vm524, 1, 0
    %v589 = vsel %vm525, 1, 0
    %v590 = vsel %vm526, 1, 0
    %v591 = vsel %vm527, 1, 0
    %v592 = vsel %vm528, 1, 0
    %v593 = vsel %vm529, 1, 0
    %v594 = vsel %vm530, 1, 0
    %v595 = vsel %vm531, 1, 0
    %v596 = vsel %vm532, 1, 0
    %v597 = vsel %vm533, 1, 0
    %v598 = vsel %vm534, 1, 0
    %v599 = vsel %vm535, 1, 0
    %v600 = vsel %vm536, 1, 0
    %v601 = vsel %vm537, 1, 0
    %v602 = vsel %vm538, 1, 0
    %v603 = vsel %vm539, 1, 0
    %v604 = vsel %vm540, 1, 0
    %v605 = vsel %vm541, 1, 0
    %v606 = vsel %vm542, 1, 0
    %v607 = vsel %vm543, 1, 0
    %v608 = vsel %vm544, 1, 0
    %v609 = vsel %vm545, 1, 0
    %v610 = vcvt.s32.f32 %v546
    %v611 = vcvt.s32.f32 %v547
    %v612 = vcvt.s32.f32 %v548
    %v613 = vcvt.s32.f32 %v549
    %v614 = vcvt.s32.f32 %v550
    %v615 = vcvt.s32.f32 %v551
    %v616 = vcvt.s32.f32 %v552
    %v617 = vcvt.s32.f32 %v553
    %v618 = vcvt.s32.f32 %v554
    %v619 = vcvt.s32.f32 %v555
    %v620 = vcvt.s32.f32 %v556
    %v621 = vcvt.s32.f32 %v557
    %v622 = vcvt.s32.f32 %v558
    %v623 = vcvt.s32.f32 %v559
    %v624 = vcvt.s32.f32 %v560
    %v625 = vcvt.s32.f32 %v561
    %v626 = vcvt.s32.f32 %v562
    %v627 = vcvt.s32.f32 %v563
    %v628 = vcvt.s32.f32 %v564
    %v629 = vcvt.s32.f32 %v565
    %v630 = vcvt.s32.f32 %v566
    %v631 = vcvt.s32.f32 %v567
    %v632 = vcvt.s32.f32 %v568
    %v633 = vcvt.s32.f32 %v569
    %v634 = vcvt.s32.f32 %v570
    %v635 = vcvt.s32.f32 %v571
    %v636 = vcvt.s32.f32 %v572
    %v637 = vcvt.s32.f32 %v573
    %v638 = vcvt.s32.f32 %v574
    %v639 = vcvt.s32.f32 %v575
    %v640 = vcvt.s32.f32 %v576
    %v641 = vcvt.s32.f32 %v577
    %v642 = vcvt.s32.f32 %v578
    %v643 = vcvt.s32.f32 %v579
    %v644 = vcvt.s32.f32 %v580
    %v645 = vcvt.s32.f32 %v581
    %v646 = vcvt.s32.f32 %v582
    %v647 = vcvt.s32.f32 %v583
    %v648 = vcvt.s32.f32 %v584
    %v649 = vcvt.s32.f32 %v585
    %v650 = vcvt.s32.f32 %v586
    %v651 = vcvt.s32.f32 %v587
    %v652 = vcvt.s32.f32 %v588
    %v653 = vcvt.s32.f32 %v589
    %v654 = vcvt.s32.f32 %v590
    %v655 = vcvt.s32.f32 %v591
    %v656 = vcvt.s32.f32 %v592
    %v657 = vcvt.s32.f32 %v593
    %v658 = vcvt.s32.f32 %v594
    %v659 = vcvt.s32.f32 %v595
    %v660 = vcvt.s32.f32 %v596
    %v661 = vcvt.s32.f32 %v597
    %v662 = vcvt.s32.f32 %v598
    %v663 = vcvt.s32.f32 %v599
    %v664 = vcvt.s32.f32 %v600
    %v665 = vcvt.s32.f32 %v601
    %v666 = vcvt.s32.f32 %v602
    %v667 = vcvt.s32.f32 %v603
    %v668 = vcvt.s32.f32 %v604
    %v669 = vcvt.s32.f32 %v605
    %v670 = vcvt.s32.f32 %v606
    %v671 = vcvt.s32.f32 %v607
    %v672 = vcvt.s32.f32 %v608
    %v673 = vcvt.s32.f32 %v609
    %v674 = vlaneseq
    %v675 = vshrl.u32 %v674, 7
    %v676 = vsub.s32 0, %v675
    %v677 = vrot.slane %v253, %v676
    %v678 = vlaneseq
    %v679 = vshrl.u32 %v678, 7
    %v680 = vsub.s32 0, %v679
    %v681 = vrot.slane %v254, %v680
    %v682 = vmul.f32 %v70, %v677
    %v683 = vmul.f32 %v70, %v681
    %v684 = vlaneseq
    %v685 = vshrl.u32 %v684, 7
    %v686 = vsub.s32 1, %v685
    %v687 = vrot.slane %v253, %v686
    %v688 = vlaneseq
    %v689 = vshrl.u32 %v688, 7
    %v690 = vsub.s32 1, %v689
    %v691 = vrot.slane %v254, %v690
    %v692 = vmul.f32 %v95, %v687
    %v693 = vmul.f32 %v95, %v691
    %v694 = vadd.f32 %v682, %v692
    %v695 = vadd.f32 %v683, %v693
    %v696 = vlaneseq
    %v697 = vshrl.u32 %v696, 7
    %v698 = vsub.s32 2, %v697
    %v699 = vrot.slane %v257, %v698
    %v700 = vlaneseq
    %v701 = vshrl.u32 %v700, 7
    %v702 = vsub.s32 2, %v701
    %v703 = vrot.slane %v258, %v702
    %v704 = vmul.f32 %v121, %v699
    %v705 = vmul.f32 %v121, %v703
    %v706 = vadd.f32 %v694, %v704
    %v707 = vadd.f32 %v695, %v705
    %v708 = vadd.f32 %v706, %v141
    %v709 = vadd.f32 %v707, %v141
    %v710 = vand.u32 2147483647, %v708
    %v711 = vand.u32 2147483647, %v709
    %v712 = vadd.f32 %v710, 1.0
    %v713 = vadd.f32 %v711, 1.0
    %v714 = vrcp.pop %v712
    %v715 = vmul.f32 %v708, %v714
    %v716 = vrcp.pop %v713
    %v717 = vmul.f32 %v709, %v716
    %v718 = vmul.f32 %v715, 1.5
    %v719 = vmul.f32 %v717, 1.5
    %v720 = vmul.f32 %v715, 0.5
    %v721 = vmul.f32 %v717, 0.5
    %v722 = vadd.f32 %v720, 0.5
    %v723 = vadd.f32 %v721, 0.5
    %v724 = vmul.f32 %v722, 15.0
    %v725 = vmul.f32 %v723, 15.0
    %v726 = vfloor.f32 %v724
    %v727 = vfloor.f32 %v725
    %v728 = vceil.f32 %v724
    %v729 = vceil.f32 %v725
    %v730 = vsub.f32 %v724, %v726
    %v731 = vsub.f32 %v725, %v727
    %v732 = vcvt.f32.s32.to.zero.pseudo %v726
    %v733 = vcvt.f32.s32.to.zero.pseudo %v727
    %v734 = vcvt.f32.s32.to.zero.pseudo %v728
    %v735 = vcvt.f32.s32.to.zero.pseudo %v729
    %v736 = vlaneseq
    %v737 = vshrl.u32 %v736, 7
    %v738 = vsub.s32 2, %v737
    %v739 = vrot.slane %v732, %v738
    %v740 = vlaneseq
    %v741 = vshrl.u32 %v740, 7
    %v742 = vsub.s32 2, %v741
    %v743 = vrot.slane %v733, %v742
    %vm744 = vcmp.eq.s32.totalorder %v33, %v739
    %vm745 = vcmp.eq.s32.totalorder %v33, %v743
    %vm746 = vcmp.eq.s32.totalorder %v34, %v739
    %vm747 = vcmp.eq.s32.totalorder %v34, %v743
    %v748 = vsel %vm744, 1, 0
    %v749 = vsel %vm745, 1, 0
    %v750 = vsel %vm746, 1, 0
    %v751 = vsel %vm747, 1, 0
    %v752 = vcvt.s32.f32 %v748
    %v753 = vcvt.s32.f32 %v749
    %v754 = vcvt.s32.f32 %v750
    %v755 = vcvt.s32.f32 %v751
    %v756 = vsub.f32 1.0, %v730
    %v757 = vsub.f32 1.0, %v731
    %v758 = vlaneseq
    %v759 = vshrl.u32 %v758, 7
    %v760 = vsub.s32 2, %v759
    %v761 = vrot.slane %v756, %v760
    %v762 = vlaneseq
    %v763 = vshrl.u32 %v762, 7
    %v764 = vsub.s32 2, %v763
    %v765 = vrot.slane %v757, %v764
    %v766 = vmul.f32 %v752, %v761
    %v767 = vmul.f32 %v753, %v765
    %v768 = vmul.f32 %v754, %v761
    %v769 = vmul.f32 %v755, %v765
    %v770 = vlaneseq
    %v771 = vshrl.u32 %v770, 7
    %v772 = vsub.s32 2, %v771
    %v773 = vrot.slane %v734, %v772
    %v774 = vlaneseq
    %v775 = vshrl.u32 %v774, 7
    %v776 = vsub.s32 2, %v775
    %v777 = vrot.slane %v735, %v776
    %vm778 = vcmp.eq.s32.totalorder %v33, %v773
    %vm779 = vcmp.eq.s32.totalorder %v33, %v777
    %vm780 = vcmp.eq.s32.totalorder %v34, %v773
    %vm781 = vcmp.eq.s32.totalorder %v34, %v777
    %v782 = vsel %vm778, 1, 0
    %v783 = vsel %vm779, 1, 0
    %v784 = vsel %vm780, 1, 0
    %v785 = vsel %vm781, 1, 0
    %v786 = vcvt.s32.f32 %v782
    %v787 = vcvt.s32.f32 %v783
    %v788 = vcvt.s32.f32 %v784
    %v789 = vcvt.s32.f32 %v785
    %v790 = vlaneseq
    %v791 = vshrl.u32 %v790, 7
    %v792 = vsub.s32 2, %v791
    %v793 = vrot.slane %v730, %v792
    %v794 = vlaneseq
    %v795 = vshrl.u32 %v794, 7
    %v796 = vsub.s32 2, %v795
    %v797 = vrot.slane %v731, %v796
    %v798 = vmul.f32 %v786, %v793
    %v799 = vmul.f32 %v787, %v797
    %v800 = vmul.f32 %v788, %v793
    %v801 = vmul.f32 %v789, %v797
    %v802 = vadd.f32 %v766, %v798
    %v803 = vadd.f32 %v767, %v799
    %v804 = vadd.f32 %v768, %v800
    %v805 = vadd.f32 %v769, %v801
    %806 = vmatprep.subr.mxu0 %v803
    %807 = vmatpush1.msra.mxu0 %v802
    %808 = vmatprep.subr.mxu0 %v805
    %809 = vmatpush1.msra.mxu0 %v804
    %810 = vmatprep.subr.mxu0 0.0
    %811 = vmatpush1.msra.mxu0 0.0
    %812 = vmatprep.subr.mxu0 0.0
    %813 = vmatpush1.msra.mxu0 0.0
    %814 = vmatprep.subr.mxu0 0.0
    %815 = vmatpush1.msra.mxu0 0.0
    %816 = vmatprep.subr.mxu0 0.0
    %817 = vmatpush1.msra.mxu0 0.0
    %818 = vmatprep.subr.mxu0 0.0
    %819 = vmatpush1.msra.mxu0 0.0
    %820 = vmatprep.subr.mxu0 0.0
    %821 = vmatpush1.msra.mxu0 0.0
    %822 = vmatprep.subr.mxu0 0.0
    %823 = vmatpush1.msra.mxu0 0.0
    %824 = vmatprep.subr.mxu0 0.0
    %825 = vmatpush1.msra.mxu0 0.0
    %826 = vmatprep.subr.mxu0 0.0
    %827 = vmatpush1.msra.mxu0 0.0
    %828 = vmatprep.subr.mxu0 0.0
    %829 = vmatpush1.msra.mxu0 0.0
    %830 = vmatprep.subr.mxu0 0.0
    %831 = vmatpush1.msra.mxu0 0.0
    %832 = vmatprep.subr.mxu0 0.0
    %833 = vmatpush1.msra.mxu0 0.0
    %834 = vmatprep.subr.mxu0 0.0
    %835 = vmatpush1.msra.mxu0 0.0
    %836 = vmatprep.subr.mxu0 0.0
    %837 = vmatpush1.msra.mxu0 0.0
    %838 = vmatprep.subr.mxu0 0.0
    %839 = vmatpush1.msra.mxu0 0.0
    %840 = vmatprep.subr.mxu0 0.0
    %841 = vmatpush1.msra.mxu0 0.0
    %842 = vmatprep.subr.mxu0 0.0
    %843 = vmatpush1.msra.mxu0 0.0
    %844 = vmatprep.subr.mxu0 0.0
    %845 = vmatpush1.msra.mxu0 0.0
    %846 = vmatprep.subr.mxu0 0.0
    %847 = vmatpush1.msra.mxu0 0.0
    %848 = vmatprep.subr.mxu0 0.0
    %849 = vmatpush1.msra.mxu0 0.0
    %850 = vmatprep.subr.mxu0 0.0
    %851 = vmatpush1.msra.mxu0 0.0
    %852 = vmatprep.subr.mxu0 0.0
    %853 = vmatpush1.msra.mxu0 0.0
    %854 = vmatprep.subr.mxu0 0.0
    %855 = vmatpush1.msra.mxu0 0.0
    %856 = vmatprep.subr.mxu0 0.0
    %857 = vmatpush1.msra.mxu0 0.0
    %858 = vmatprep.subr.mxu0 0.0
    %859 = vmatpush1.msra.mxu0 0.0
    %860 = vmatprep.subr.mxu0 0.0
    %861 = vmatpush1.msra.mxu0 0.0
    %862 = vmatprep.subr.mxu0 0.0
    %863 = vmatpush1.msra.mxu0 0.0
    %864 = vmatprep.subr.mxu0 0.0
    %865 = vmatpush1.msra.mxu0 0.0
    %866 = vmatprep.subr.mxu0 0.0
    %867 = vmatpush1.msra.mxu0 0.0
    %868 = vmatprep.subr.mxu0 0.0
    %869 = vmatpush1.msra.mxu0 0.0
    %870 = vmatprep.mubr.f32.mxu0 0.0
    %871 = vmatmul.mubr.f32.gmra.mrb[0].mxu0 %v343
    %v872 = vpop.f32.mrb[0].mxu0
    %v873 = vadd.f32 0.0, %v872
    %v874 = vpop.f32.mrb[0].mxu0
    %v875 = vadd.f32 0.0, %v874
    %876 = vdwg.mxu0
    %v877 = vsub.f32 %v718, %v419
    %v878 = vsub.f32 %v719, %v419
    %v879 = vmul.f32 %v877, %v426
    %v880 = vmul.f32 %v878, %v426
    %v881 = vcvt.f32.s32.to.zero.pseudo %v879
    %v882 = vcvt.f32.s32.to.zero.pseudo %v880
    %vm883 = vcmp.ge.s32.totalorder %v881, 0
    %vm884 = vcmp.ge.s32.totalorder %v882, 0
    %vm885 = vcmp.lt.s32.totalorder %v881, 16
    %vm886 = vcmp.lt.s32.totalorder %v882, 16
    %vm887 = vmand %vm883, %vm885
    %vm888 = vmand %vm884, %vm886
    %v889 = vsel %vm883, 1, 0
    %v890 = vsel %vm884, 1, 0
    %v891 = vrot.slane %v889, 1
    %v892 = vrot.slane %v890, 1
    %vm893 = vcmp.ne.s32.totalorder %v891, 0
    %vm894 = vcmp.ne.s32.totalorder %v892, 0
    %vm895 = vmand %vm887, %vm893
    %vm896 = vmand %vm888, %vm894
    %v897 = vsel %vm885, 1, 0
    %v898 = vsel %vm886, 1, 0
    %v899 = vrot.slane %v897, 1
    %v900 = vrot.slane %v898, 1
    %vm901 = vcmp.ne.s32.totalorder %v899, 0
    %vm902 = vcmp.ne.s32.totalorder %v900, 0
    %vm903 = vmand %vm895, %vm901
    %vm904 = vmand %vm896, %vm902
    %v905 = vsel %vm903, 1, 0
    %v906 = vsel %vm904, 1, 0
    %v907 = vcvt.s32.f32 %v905
    %v908 = vcvt.s32.f32 %v906
    %v909 = vlaneseq
    %v910 = vshrl.u32 %v909, 7
    %v911 = vsub.s32 0, %v910
    %v912 = vrot.slane %v907, %v911
    %v913 = vlaneseq
    %v914 = vshrl.u32 %v913, 7
    %v915 = vsub.s32 0, %v914
    %v916 = vrot.slane %v908, %v915
    %v917 = vmul.f32 %v873, %v912
    %v918 = vmul.f32 %v875, %v916
    %v919 = vmul.u32 %v881, 16
    %v920 = vmul.u32 %v882, 16
    %v921 = vrot.slane %v881, 1
    %v922 = vrot.slane %v882, 1
    %v923 = vadd.s32 %v919, %v921
    %v924 = vadd.s32 %v920, %v922
    %v925 = vlaneseq
    %v926 = vshrl.u32 %v925, 7
    %v927 = vsub.s32 0, %v926
    %v928 = vrot.slane %v923, %v927
    %v929 = vlaneseq
    %v930 = vshrl.u32 %v929, 7
    %v931 = vsub.s32 0, %v930
    %v932 = vrot.slane %v924, %v931
    %vm933 = vcmp.eq.s32.totalorder %v33, %v928
    %vm934 = vcmp.eq.s32.totalorder %v33, %v932
    %vm935 = vcmp.eq.s32.totalorder %v34, %v928
    %vm936 = vcmp.eq.s32.totalorder %v34, %v932
    %vm937 = vcmp.eq.s32.totalorder %v35, %v928
    %vm938 = vcmp.eq.s32.totalorder %v35, %v932
    %vm939 = vcmp.eq.s32.totalorder %v36, %v928
    %vm940 = vcmp.eq.s32.totalorder %v36, %v932
    %vm941 = vcmp.eq.s32.totalorder %v37, %v928
    %vm942 = vcmp.eq.s32.totalorder %v37, %v932
    %vm943 = vcmp.eq.s32.totalorder %v38, %v928
    %vm944 = vcmp.eq.s32.totalorder %v38, %v932
    %vm945 = vcmp.eq.s32.totalorder %v39, %v928
    %vm946 = vcmp.eq.s32.totalorder %v39, %v932
    %vm947 = vcmp.eq.s32.totalorder %v40, %v928
    %vm948 = vcmp.eq.s32.totalorder %v40, %v932
    %vm949 = vcmp.eq.s32.totalorder %v41, %v928
    %vm950 = vcmp.eq.s32.totalorder %v41, %v932
    %vm951 = vcmp.eq.s32.totalorder %v42, %v928
    %vm952 = vcmp.eq.s32.totalorder %v42, %v932
    %vm953 = vcmp.eq.s32.totalorder %v43, %v928
    %vm954 = vcmp.eq.s32.totalorder %v43, %v932
    %vm955 = vcmp.eq.s32.totalorder %v44, %v928
    %vm956 = vcmp.eq.s32.totalorder %v44, %v932
    %vm957 = vcmp.eq.s32.totalorder %v45, %v928
    %vm958 = vcmp.eq.s32.totalorder %v45, %v932
    %vm959 = vcmp.eq.s32.totalorder %v46, %v928
    %vm960 = vcmp.eq.s32.totalorder %v46, %v932
    %vm961 = vcmp.eq.s32.totalorder %v47, %v928
    %vm962 = vcmp.eq.s32.totalorder %v47, %v932
    %vm963 = vcmp.eq.s32.totalorder %v48, %v928
    %vm964 = vcmp.eq.s32.totalorder %v48, %v932
    %vm965 = vcmp.eq.s32.totalorder %v49, %v928
    %vm966 = vcmp.eq.s32.totalorder %v49, %v932
    %vm967 = vcmp.eq.s32.totalorder %v50, %v928
    %vm968 = vcmp.eq.s32.totalorder %v50, %v932
    %vm969 = vcmp.eq.s32.totalorder %v51, %v928
    %vm970 = vcmp.eq.s32.totalorder %v51, %v932
    %vm971 = vcmp.eq.s32.totalorder %v52, %v928
    %vm972 = vcmp.eq.s32.totalorder %v52, %v932
    %vm973 = vcmp.eq.s32.totalorder %v53, %v928
    %vm974 = vcmp.eq.s32.totalorder %v53, %v932
    %vm975 = vcmp.eq.s32.totalorder %v54, %v928
    %vm976 = vcmp.eq.s32.totalorder %v54, %v932
    %vm977 = vcmp.eq.s32.totalorder %v55, %v928
    %vm978 = vcmp.eq.s32.totalorder %v55, %v932
    %vm979 = vcmp.eq.s32.totalorder %v56, %v928
    %vm980 = vcmp.eq.s32.totalorder %v56, %v932
    %vm981 = vcmp.eq.s32.totalorder %v57, %v928
    %vm982 = vcmp.eq.s32.totalorder %v57, %v932
    %vm983 = vcmp.eq.s32.totalorder %v58, %v928
    %vm984 = vcmp.eq.s32.totalorder %v58, %v932
    %vm985 = vcmp.eq.s32.totalorder %v59, %v928
    %vm986 = vcmp.eq.s32.totalorder %v59, %v932
    %vm987 = vcmp.eq.s32.totalorder %v60, %v928
    %vm988 = vcmp.eq.s32.totalorder %v60, %v932
    %vm989 = vcmp.eq.s32.totalorder %v61, %v928
    %vm990 = vcmp.eq.s32.totalorder %v61, %v932
    %vm991 = vcmp.eq.s32.totalorder %v62, %v928
    %vm992 = vcmp.eq.s32.totalorder %v62, %v932
    %vm993 = vcmp.eq.s32.totalorder %v63, %v928
    %vm994 = vcmp.eq.s32.totalorder %v63, %v932
    %vm995 = vcmp.eq.s32.totalorder %v64, %v928
    %vm996 = vcmp.eq.s32.totalorder %v64, %v932
    %v997 = vsel %vm933, 1, 0
    %v998 = vsel %vm934, 1, 0
    %v999 = vsel %vm935, 1, 0
    %v1000 = vsel %vm936, 1, 0
    %v1001 = vsel %vm937, 1, 0
    %v1002 = vsel %vm938, 1, 0
    %v1003 = vsel %vm939, 1, 0
    %v1004 = vsel %vm940, 1, 0
    %v1005 = vsel %vm941, 1, 0
    %v1006 = vsel %vm942, 1, 0
    %v1007 = vsel %vm943, 1, 0
    %v1008 = vsel %vm944, 1, 0
    %v1009 = vsel %vm945, 1, 0
    %v1010 = vsel %vm946, 1, 0
    %v1011 = vsel %vm947, 1, 0
    %v1012 = vsel %vm948, 1, 0
    %v1013 = vsel %vm949, 1, 0
    %v1014 = vsel %vm950, 1, 0
    %v1015 = vsel %vm951, 1, 0
    %v1016 = vsel %vm952, 1, 0
    %v1017 = vsel %vm953, 1, 0
    %v1018 = vsel %vm954, 1, 0
    %v1019 = vsel %vm955, 1, 0
    %v1020 = vsel %vm956, 1, 0
    %v1021 = vsel %vm957, 1, 0
    %v1022 = vsel %vm958, 1, 0
    %v1023 = vsel %vm959, 1, 0
    %v1024 = vsel %vm960, 1, 0
    %v1025 = vsel %vm961, 1, 0
    %v1026 = vsel %vm962, 1, 0
    %v1027 = vsel %vm963, 1, 0
    %v1028 = vsel %vm964, 1, 0
    %v1029 = vsel %vm965, 1, 0
    %v1030 = vsel %vm966, 1, 0
    %v1031 = vsel %vm967, 1, 0
    %v1032 = vsel %vm968, 1, 0
    %v1033 = vsel %vm969, 1, 0
    %v1034 = vsel %vm970, 1, 0
    %v1035 = vsel %vm971, 1, 0
    %v1036 = vsel %vm972, 1, 0
    %v1037 = vsel %vm973, 1, 0
    %v1038 = vsel %vm974, 1, 0
    %v1039 = vsel %vm975, 1, 0
    %v1040 = vsel %vm976, 1, 0
    %v1041 = vsel %vm977, 1, 0
    %v1042 = vsel %vm978, 1, 0
    %v1043 = vsel %vm979, 1, 0
    %v1044 = vsel %vm980, 1, 0
    %v1045 = vsel %vm981, 1, 0
    %v1046 = vsel %vm982, 1, 0
    %v1047 = vsel %vm983, 1, 0
    %v1048 = vsel %vm984, 1, 0
    %v1049 = vsel %vm985, 1, 0
    %v1050 = vsel %vm986, 1, 0
    %v1051 = vsel %vm987, 1, 0
    %v1052 = vsel %vm988, 1, 0
    %v1053 = vsel %vm989, 1, 0
    %v1054 = vsel %vm990, 1, 0
    %v1055 = vsel %vm991, 1, 0
    %v1056 = vsel %vm992, 1, 0
    %v1057 = vsel %vm993, 1, 0
    %v1058 = vsel %vm994, 1, 0
    %v1059 = vsel %vm995, 1, 0
    %v1060 = vsel %vm996, 1, 0
    %v1061 = vcvt.s32.f32 %v997
    %v1062 = vcvt.s32.f32 %v998
    %v1063 = vcvt.s32.f32 %v999
    %v1064 = vcvt.s32.f32 %v1000
    %v1065 = vcvt.s32.f32 %v1001
    %v1066 = vcvt.s32.f32 %v1002
    %v1067 = vcvt.s32.f32 %v1003
    %v1068 = vcvt.s32.f32 %v1004
    %v1069 = vcvt.s32.f32 %v1005
    %v1070 = vcvt.s32.f32 %v1006
    %v1071 = vcvt.s32.f32 %v1007
    %v1072 = vcvt.s32.f32 %v1008
    %v1073 = vcvt.s32.f32 %v1009
    %v1074 = vcvt.s32.f32 %v1010
    %v1075 = vcvt.s32.f32 %v1011
    %v1076 = vcvt.s32.f32 %v1012
    %v1077 = vcvt.s32.f32 %v1013
    %v1078 = vcvt.s32.f32 %v1014
    %v1079 = vcvt.s32.f32 %v1015
    %v1080 = vcvt.s32.f32 %v1016
    %v1081 = vcvt.s32.f32 %v1017
    %v1082 = vcvt.s32.f32 %v1018
    %v1083 = vcvt.s32.f32 %v1019
    %v1084 = vcvt.s32.f32 %v1020
    %v1085 = vcvt.s32.f32 %v1021
    %v1086 = vcvt.s32.f32 %v1022
    %v1087 = vcvt.s32.f32 %v1023
    %v1088 = vcvt.s32.f32 %v1024
    %v1089 = vcvt.s32.f32 %v1025
    %v1090 = vcvt.s32.f32 %v1026
    %v1091 = vcvt.s32.f32 %v1027
    %v1092 = vcvt.s32.f32 %v1028
    %v1093 = vcvt.s32.f32 %v1029
    %v1094 = vcvt.s32.f32 %v1030
    %v1095 = vcvt.s32.f32 %v1031
    %v1096 = vcvt.s32.f32 %v1032
    %v1097 = vcvt.s32.f32 %v1033
    %v1098 = vcvt.s32.f32 %v1034
    %v1099 = vcvt.s32.f32 %v1035
    %v1100 = vcvt.s32.f32 %v1036
    %v1101 = vcvt.s32.f32 %v1037
    %v1102 = vcvt.s32.f32 %v1038
    %v1103 = vcvt.s32.f32 %v1039
    %v1104 = vcvt.s32.f32 %v1040
    %v1105 = vcvt.s32.f32 %v1041
    %v1106 = vcvt.s32.f32 %v1042
    %v1107 = vcvt.s32.f32 %v1043
    %v1108 = vcvt.s32.f32 %v1044
    %v1109 = vcvt.s32.f32 %v1045
    %v1110 = vcvt.s32.f32 %v1046
    %v1111 = vcvt.s32.f32 %v1047
    %v1112 = vcvt.s32.f32 %v1048
    %v1113 = vcvt.s32.f32 %v1049
    %v1114 = vcvt.s32.f32 %v1050
    %v1115 = vcvt.s32.f32 %v1051
    %v1116 = vcvt.s32.f32 %v1052
    %v1117 = vcvt.s32.f32 %v1053
    %v1118 = vcvt.s32.f32 %v1054
    %v1119 = vcvt.s32.f32 %v1055
    %v1120 = vcvt.s32.f32 %v1056
    %v1121 = vcvt.s32.f32 %v1057
    %v1122 = vcvt.s32.f32 %v1058
    %v1123 = vcvt.s32.f32 %v1059
    %v1124 = vcvt.s32.f32 %v1060
    %1125 = vmatprep.subr.mxu0 %v1062
    %1126 = vmatpush1.xpose.msra.mxu0 %v1061
    %1127 = vmatprep.subr.mxu0 %v1064
    %1128 = vmatpush1.xpose.msra.mxu0 %v1063
    %1129 = vmatprep.subr.mxu0 %v1066
    %1130 = vmatpush1.xpose.msra.mxu0 %v1065
    %1131 = vmatprep.subr.mxu0 %v1068
    %1132 = vmatpush1.xpose.msra.mxu0 %v1067
    %1133 = vmatprep.subr.mxu0 %v1070
    %1134 = vmatpush1.xpose.msra.mxu0 %v1069
    %1135 = vmatprep.subr.mxu0 %v1072
    %1136 = vmatpush1.xpose.msra.mxu0 %v1071
    %1137 = vmatprep.subr.mxu0 %v1074
    %1138 = vmatpush1.xpose.msra.mxu0 %v1073
    %1139 = vmatprep.subr.mxu0 %v1076
    %1140 = vmatpush1.xpose.msra.mxu0 %v1075
    %1141 = vmatprep.subr.mxu0 %v1078
    %1142 = vmatpush1.xpose.msra.mxu0 %v1077
    %1143 = vmatprep.subr.mxu0 %v1080
    %1144 = vmatpush1.xpose.msra.mxu0 %v1079
    %1145 = vmatprep.subr.mxu0 %v1082
    %1146 = vmatpush1.xpose.msra.mxu0 %v1081
    %1147 = vmatprep.subr.mxu0 %v1084
    %1148 = vmatpush1.xpose.msra.mxu0 %v1083
    %1149 = vmatprep.subr.mxu0 %v1086
    %1150 = vmatpush1.xpose.msra.mxu0 %v1085
    %1151 = vmatprep.subr.mxu0 %v1088
    %1152 = vmatpush1.xpose.msra.mxu0 %v1087
    %1153 = vmatprep.subr.mxu0 %v1090
    %1154 = vmatpush1.xpose.msra.mxu0 %v1089
    %1155 = vmatprep.subr.mxu0 %v1092
    %1156 = vmatpush1.xpose.msra.mxu0 %v1091
    %1157 = vmatprep.subr.mxu0 %v1094
    %1158 = vmatpush1.xpose.msra.mxu0 %v1093
    %1159 = vmatprep.subr.mxu0 %v1096
    %1160 = vmatpush1.xpose.msra.mxu0 %v1095
    %1161 = vmatprep.subr.mxu0 %v1098
    %1162 = vmatpush1.xpose.msra.mxu0 %v1097
    %1163 = vmatprep.subr.mxu0 %v1100
    %1164 = vmatpush1.xpose.msra.mxu0 %v1099
    %1165 = vmatprep.subr.mxu0 %v1102
    %1166 = vmatpush1.xpose.msra.mxu0 %v1101
    %1167 = vmatprep.subr.mxu0 %v1104
    %1168 = vmatpush1.xpose.msra.mxu0 %v1103
    %1169 = vmatprep.subr.mxu0 %v1106
    %1170 = vmatpush1.xpose.msra.mxu0 %v1105
    %1171 = vmatprep.subr.mxu0 %v1108
    %1172 = vmatpush1.xpose.msra.mxu0 %v1107
    %1173 = vmatprep.subr.mxu0 %v1110
    %1174 = vmatpush1.xpose.msra.mxu0 %v1109
    %1175 = vmatprep.subr.mxu0 %v1112
    %1176 = vmatpush1.xpose.msra.mxu0 %v1111
    %1177 = vmatprep.subr.mxu0 %v1114
    %1178 = vmatpush1.xpose.msra.mxu0 %v1113
    %1179 = vmatprep.subr.mxu0 %v1116
    %1180 = vmatpush1.xpose.msra.mxu0 %v1115
    %1181 = vmatprep.subr.mxu0 %v1118
    %1182 = vmatpush1.xpose.msra.mxu0 %v1117
    %1183 = vmatprep.subr.mxu0 %v1120
    %1184 = vmatpush1.xpose.msra.mxu0 %v1119
    %1185 = vmatprep.subr.mxu0 %v1122
    %1186 = vmatpush1.xpose.msra.mxu0 %v1121
    %1187 = vmatprep.subr.mxu0 %v1124
    %1188 = vmatpush1.xpose.msra.mxu0 %v1123
    %1189 = vmatprep.mubr.f32.mxu0 %v918
    %1190 = vmatmul.mubr.f32.gmra.mrb[0].mxu0 %v917
    %v1191 = vpop.f32.mrb[0].mxu0
    %v1192 = vadd.f32 0.0, %v1191
    %v1193 = vpop.f32.mrb[0].mxu0
    %v1194 = vadd.f32 0.0, %v1193
    %1195 = vdwg.mxu0
    %1196 = vmatprep.subr.mxu0 %v611
    %1197 = vmatpush1.xpose.msra.mxu0 %v610
    %1198 = vmatprep.subr.mxu0 %v613
    %1199 = vmatpush1.xpose.msra.mxu0 %v612
    %1200 = vmatprep.subr.mxu0 %v615
    %1201 = vmatpush1.xpose.msra.mxu0 %v614
    %1202 = vmatprep.subr.mxu0 %v617
    %1203 = vmatpush1.xpose.msra.mxu0 %v616
    %1204 = vmatprep.subr.mxu0 %v619
    %1205 = vmatpush1.xpose.msra.mxu0 %v618
    %1206 = vmatprep.subr.mxu0 %v621
    %1207 = vmatpush1.xpose.msra.mxu0 %v620
    %1208 = vmatprep.subr.mxu0 %v623
    %1209 = vmatpush1.xpose.msra.mxu0 %v622
    %1210 = vmatprep.subr.mxu0 %v625
    %1211 = vmatpush1.xpose.msra.mxu0 %v624
    %1212 = vmatprep.subr.mxu0 %v627
    %1213 = vmatpush1.xpose.msra.mxu0 %v626
    %1214 = vmatprep.subr.mxu0 %v629
    %1215 = vmatpush1.xpose.msra.mxu0 %v628
    %1216 = vmatprep.subr.mxu0 %v631
    %1217 = vmatpush1.xpose.msra.mxu0 %v630
    %1218 = vmatprep.subr.mxu0 %v633
    %1219 = vmatpush1.xpose.msra.mxu0 %v632
    %1220 = vmatprep.subr.mxu0 %v635
    %1221 = vmatpush1.xpose.msra.mxu0 %v634
    %1222 = vmatprep.subr.mxu0 %v637
    %1223 = vmatpush1.xpose.msra.mxu0 %v636
    %1224 = vmatprep.subr.mxu0 %v639
    %1225 = vmatpush1.xpose.msra.mxu0 %v638
    %1226 = vmatprep.subr.mxu0 %v641
    %1227 = vmatpush1.xpose.msra.mxu0 %v640
    %1228 = vmatprep.subr.mxu0 %v643
    %1229 = vmatpush1.xpose.msra.mxu0 %v642
    %1230 = vmatprep.subr.mxu0 %v645
    %1231 = vmatpush1.xpose.msra.mxu0 %v644
    %1232 = vmatprep.subr.mxu0 %v647
    %1233 = vmatpush1.xpose.msra.mxu0 %v646
    %1234 = vmatprep.subr.mxu0 %v649
    %1235 = vmatpush1.xpose.msra.mxu0 %v648
    %1236 = vmatprep.subr.mxu0 %v651
    %1237 = vmatpush1.xpose.msra.mxu0 %v650
    %1238 = vmatprep.subr.mxu0 %v653
    %1239 = vmatpush1.xpose.msra.mxu0 %v652
    %1240 = vmatprep.subr.mxu0 %v655
    %1241 = vmatpush1.xpose.msra.mxu0 %v654
    %1242 = vmatprep.subr.mxu0 %v657
    %1243 = vmatpush1.xpose.msra.mxu0 %v656
    %1244 = vmatprep.subr.mxu0 %v659
    %1245 = vmatpush1.xpose.msra.mxu0 %v658
    %1246 = vmatprep.subr.mxu0 %v661
    %1247 = vmatpush1.xpose.msra.mxu0 %v660
    %1248 = vmatprep.subr.mxu0 %v663
    %1249 = vmatpush1.xpose.msra.mxu0 %v662
    %1250 = vmatprep.subr.mxu0 %v665
    %1251 = vmatpush1.xpose.msra.mxu0 %v664
    %1252 = vmatprep.subr.mxu0 %v667
    %1253 = vmatpush1.xpose.msra.mxu0 %v666
    %1254 = vmatprep.subr.mxu0 %v669
    %1255 = vmatpush1.xpose.msra.mxu0 %v668
    %1256 = vmatprep.subr.mxu0 %v671
    %1257 = vmatpush1.xpose.msra.mxu0 %v670
    %1258 = vmatprep.subr.mxu0 %v673
    %1259 = vmatpush1.xpose.msra.mxu0 %v672
    %1260 = vmatprep.mubr.f32.mxu0 %v467
    %1261 = vmatmul.mubr.f32.gmra.mrb[0].mxu0 %v466
    %v1262 = vpop.f32.mrb[0].mxu0
    %v1263 = vadd.f32 %v1192, %v1262
    %v1264 = vpop.f32.mrb[0].mxu0
    %v1265 = vadd.f32 %v1194, %v1264
    %1266 = vdwg.mxu0
    %v1267 = vlaneseq
    %v1268 = vshrl.u32 %v1267, 7
    %v1269 = vsub.s32 0, %v1268
    %v1270 = vrot.slane %v718, %v1269
    %v1271 = vlaneseq
    %v1272 = vshrl.u32 %v1271, 7
    %v1273 = vsub.s32 0, %v1272
    %v1274 = vrot.slane %v719, %v1273
    %v1275 = vmul.f32 %v70, %v1270
    %v1276 = vmul.f32 %v70, %v1274
    %v1277 = vlaneseq
    %v1278 = vshrl.u32 %v1277, 7
    %v1279 = vsub.s32 1, %v1278
    %v1280 = vrot.slane %v718, %v1279
    %v1281 = vlaneseq
    %v1282 = vshrl.u32 %v1281, 7
    %v1283 = vsub.s32 1, %v1282
    %v1284 = vrot.slane %v719, %v1283
    %v1285 = vmul.f32 %v95, %v1280
    %v1286 = vmul.f32 %v95, %v1284
    %v1287 = vadd.f32 %v1275, %v1285
    %v1288 = vadd.f32 %v1276, %v1286
    %v1289 = vlaneseq
    %v1290 = vshrl.u32 %v1289, 7
    %v1291 = vsub.s32 2, %v1290
    %v1292 = vrot.slane %v722, %v1291
    %v1293 = vlaneseq
    %v1294 = vshrl.u32 %v1293, 7
    %v1295 = vsub.s32 2, %v1294
    %v1296 = vrot.slane %v723, %v1295
    %v1297 = vmul.f32 %v121, %v1292
    %v1298 = vmul.f32 %v121, %v1296
    %v1299 = vadd.f32 %v1287, %v1297
    %v1300 = vadd.f32 %v1288, %v1298
    %v1301 = vadd.f32 %v1299, %v141
    %v1302 = vadd.f32 %v1300, %v141
    %v1303 = vand.u32 2147483647, %v1301
    %v1304 = vand.u32 2147483647, %v1302
    %v1305 = vadd.f32 %v1303, 1.0
    %v1306 = vadd.f32 %v1304, 1.0
    %v1307 = vrcp.pop %v1305
    %v1308 = vmul.f32 %v1301, %v1307
    %v1309 = vrcp.pop %v1306
    %v1310 = vmul.f32 %v1302, %v1309
    %v1311 = vmul.f32 %v1308, 1.5
    %v1312 = vmul.f32 %v1310, 1.5
    %v1313 = vmul.f32 %v1308, 0.5
    %v1314 = vmul.f32 %v1310, 0.5
    %v1315 = vadd.f32 %v1313, 0.5
    %v1316 = vadd.f32 %v1314, 0.5
    %v1317 = vmul.f32 %v1315, 15.0
    %v1318 = vmul.f32 %v1316, 15.0
    %v1319 = vfloor.f32 %v1317
    %v1320 = vfloor.f32 %v1318
    %v1321 = vceil.f32 %v1317
    %v1322 = vceil.f32 %v1318
    %v1323 = vsub.f32 %v1317, %v1319
    %v1324 = vsub.f32 %v1318, %v1320
    %v1325 = vcvt.f32.s32.to.zero.pseudo %v1319
    %v1326 = vcvt.f32.s32.to.zero.pseudo %v1320
    %v1327 = vcvt.f32.s32.to.zero.pseudo %v1321
    %v1328 = vcvt.f32.s32.to.zero.pseudo %v1322
    %v1329 = vlaneseq
    %v1330 = vshrl.u32 %v1329, 7
    %v1331 = vsub.s32 2, %v1330
    %v1332 = vrot.slane %v1325, %v1331
    %v1333 = vlaneseq
    %v1334 = vshrl.u32 %v1333, 7
    %v1335 = vsub.s32 2, %v1334
    %v1336 = vrot.slane %v1326, %v1335
    %vm1337 = vcmp.eq.s32.totalorder %v33, %v1332
    %vm1338 = vcmp.eq.s32.totalorder %v33, %v1336
    %vm1339 = vcmp.eq.s32.totalorder %v34, %v1332
    %vm1340 = vcmp.eq.s32.totalorder %v34, %v1336
    %v1341 = vsel %vm1337, 1, 0
    %v1342 = vsel %vm1338, 1, 0
    %v1343 = vsel %vm1339, 1, 0
    %v1344 = vsel %vm1340, 1, 0
    %v1345 = vcvt.s32.f32 %v1341
    %v1346 = vcvt.s32.f32 %v1342
    %v1347 = vcvt.s32.f32 %v1343
    %v1348 = vcvt.s32.f32 %v1344
    %v1349 = vsub.f32 1.0, %v1323
    %v1350 = vsub.f32 1.0, %v1324
    %v1351 = vlaneseq
    %v1352 = vshrl.u32 %v1351, 7
    %v1353 = vsub.s32 2, %v1352
    %v1354 = vrot.slane %v1349, %v1353
    %v1355 = vlaneseq
    %v1356 = vshrl.u32 %v1355, 7
    %v1357 = vsub.s32 2, %v1356
    %v1358 = vrot.slane %v1350, %v1357
    %v1359 = vmul.f32 %v1345, %v1354
    %v1360 = vmul.f32 %v1346, %v1358
    %v1361 = vmul.f32 %v1347, %v1354
    %v1362 = vmul.f32 %v1348, %v1358
    %v1363 = vlaneseq
    %v1364 = vshrl.u32 %v1363, 7
    %v1365 = vsub.s32 2, %v1364
    %v1366 = vrot.slane %v1327, %v1365
    %v1367 = vlaneseq
    %v1368 = vshrl.u32 %v1367, 7
    %v1369 = vsub.s32 2, %v1368
    %v1370 = vrot.slane %v1328, %v1369
    %vm1371 = vcmp.eq.s32.totalorder %v33, %v1366
    %vm1372 = vcmp.eq.s32.totalorder %v33, %v1370
    %vm1373 = vcmp.eq.s32.totalorder %v34, %v1366
    %vm1374 = vcmp.eq.s32.totalorder %v34, %v1370
    %v1375 = vsel %vm1371, 1, 0
    %v1376 = vsel %vm1372, 1, 0
    %v1377 = vsel %vm1373, 1, 0
    %v1378 = vsel %vm1374, 1, 0
    %v1379 = vcvt.s32.f32 %v1375
    %v1380 = vcvt.s32.f32 %v1376
    %v1381 = vcvt.s32.f32 %v1377
    %v1382 = vcvt.s32.f32 %v1378
    %v1383 = vlaneseq
    %v1384 = vshrl.u32 %v1383, 7
    %v1385 = vsub.s32 2, %v1384
    %v1386 = vrot.slane %v1323, %v1385
    %v1387 = vlaneseq
    %v1388 = vshrl.u32 %v1387, 7
    %v1389 = vsub.s32 2, %v1388
    %v1390 = vrot.slane %v1324, %v1389
    %v1391 = vmul.f32 %v1379, %v1386
    %v1392 = vmul.f32 %v1380, %v1390
    %v1393 = vmul.f32 %v1381, %v1386
    %v1394 = vmul.f32 %v1382, %v1390
    %v1395 = vadd.f32 %v1359, %v1391
    %v1396 = vadd.f32 %v1360, %v1392
    %v1397 = vadd.f32 %v1361, %v1393
    %v1398 = vadd.f32 %v1362, %v1394
    %1399 = vmatprep.subr.mxu0 %v1396
    %1400 = vmatpush1.msra.mxu0 %v1395
    %1401 = vmatprep.subr.mxu0 %v1398
    %1402 = vmatpush1.msra.mxu0 %v1397
    %1403 = vmatprep.subr.mxu0 0.0
    %1404 = vmatpush1.msra.mxu0 0.0
    %1405 = vmatprep.subr.mxu0 0.0
    %1406 = vmatpush1.msra.mxu0 0.0
    %1407 = vmatprep.subr.mxu0 0.0
    %1408 = vmatpush1.msra.mxu0 0.0
    %1409 = vmatprep.subr.mxu0 0.0
    %1410 = vmatpush1.msra.mxu0 0.0
    %1411 = vmatprep.subr.mxu0 0.0
    %1412 = vmatpush1.msra.mxu0 0.0
    %1413 = vmatprep.subr.mxu0 0.0
    %1414 = vmatpush1.msra.mxu0 0.0
    %1415 = vmatprep.subr.mxu0 0.0
    %1416 = vmatpush1.msra.mxu0 0.0
    %1417 = vmatprep.subr.mxu0 0.0
    %1418 = vmatpush1.msra.mxu0 0.0
    %1419 = vmatprep.subr.mxu0 0.0
    %1420 = vmatpush1.msra.mxu0 0.0
    %1421 = vmatprep.subr.mxu0 0.0
    %1422 = vmatpush1.msra.mxu0 0.0
    %1423 = vmatprep.subr.mxu0 0.0
    %1424 = vmatpush1.msra.mxu0 0.0
    %1425 = vmatprep.subr.mxu0 0.0
    %1426 = vmatpush1.msra.mxu0 0.0
    %1427 = vmatprep.subr.mxu0 0.0
    %1428 = vmatpush1.msra.mxu0 0.0
    %1429 = vmatprep.subr.mxu0 0.0
    %1430 = vmatpush1.msra.mxu0 0.0
    %1431 = vmatprep.subr.mxu0 0.0
    %1432 = vmatpush1.msra.mxu0 0.0
    %1433 = vmatprep.subr.mxu0 0.0
    %1434 = vmatpush1.msra.mxu0 0.0
    %1435 = vmatprep.subr.mxu0 0.0
    %1436 = vmatpush1.msra.mxu0 0.0
    %1437 = vmatprep.subr.mxu0 0.0
    %1438 = vmatpush1.msra.mxu0 0.0
    %1439 = vmatprep.subr.mxu0 0.0
    %1440 = vmatpush1.msra.mxu0 0.0
    %1441 = vmatprep.subr.mxu0 0.0
    %1442 = vmatpush1.msra.mxu0 0.0
    %1443 = vmatprep.subr.mxu0 0.0
    %1444 = vmatpush1.msra.mxu0 0.0
    %1445 = vmatprep.subr.mxu0 0.0
    %1446 = vmatpush1.msra.mxu0 0.0
    %1447 = vmatprep.subr.mxu0 0.0
    %1448 = vmatpush1.msra.mxu0 0.0
    %1449 = vmatprep.subr.mxu0 0.0
    %1450 = vmatpush1.msra.mxu0 0.0
    %1451 = vmatprep.subr.mxu0 0.0
    %1452 = vmatpush1.msra.mxu0 0.0
    %1453 = vmatprep.subr.mxu0 0.0
    %1454 = vmatpush1.msra.mxu0 0.0
    %1455 = vmatprep.subr.mxu0 0.0
    %1456 = vmatpush1.msra.mxu0 0.0
    %1457 = vmatprep.subr.mxu0 0.0
    %1458 = vmatpush1.msra.mxu0 0.0
    %1459 = vmatprep.subr.mxu0 0.0
    %1460 = vmatpush1.msra.mxu0 0.0
    %1461 = vmatprep.subr.mxu0 0.0
    %1462 = vmatpush1.msra.mxu0 0.0
    %1463 = vmatprep.mubr.f32.mxu0 0.0
    %1464 = vmatmul.mubr.f32.gmra.mrb[0].mxu0 %v343
    %v1465 = vpop.f32.mrb[0].mxu0
    %v1466 = vadd.f32 0.0, %v1465
    %v1467 = vpop.f32.mrb[0].mxu0
    %v1468 = vadd.f32 0.0, %v1467
    %1469 = vdwg.mxu0
    %v1470 = vsub.f32 %v1311, %v419
    %v1471 = vsub.f32 %v1312, %v419
    %v1472 = vmul.f32 %v1470, %v426
    %v1473 = vmul.f32 %v1471, %v426
    %v1474 = vcvt.f32.s32.to.zero.pseudo %v1472
    %v1475 = vcvt.f32.s32.to.zero.pseudo %v1473
    %vm1476 = vcmp.ge.s32.totalorder %v1474, 0
    %vm1477 = vcmp.ge.s32.totalorder %v1475, 0
    %vm1478 = vcmp.lt.s32.totalorder %v1474, 16
    %vm1479 = vcmp.lt.s32.totalorder %v1475, 16
    %vm1480 = vmand %vm1476, %vm1478
    %vm1481 = vmand %vm1477, %vm1479
    %v1482 = vsel %vm1476, 1, 0
    %v1483 = vsel %vm1477, 1, 0
    %v1484 = vrot.slane %v1482, 1
    %v1485 = vrot.slane %v1483, 1
    %vm1486 = vcmp.ne.s32.totalorder %v1484, 0
    %vm1487 = vcmp.ne.s32.totalorder %v1485, 0
    %vm1488 = vmand %vm1480, %vm1486
    %vm1489 = vmand %vm1481, %vm1487
    %v1490 = vsel %vm1478, 1, 0
    %v1491 = vsel %vm1479, 1, 0
    %v1492 = vrot.slane %v1490, 1
    %v1493 = vrot.slane %v1491, 1
    %vm1494 = vcmp.ne.s32.totalorder %v1492, 0
    %vm1495 = vcmp.ne.s32.totalorder %v1493, 0
    %vm1496 = vmand %vm1488, %vm1494
    %vm1497 = vmand %vm1489, %vm1495
    %v1498 = vsel %vm1496, 1, 0
    %v1499 = vsel %vm1497, 1, 0
    %v1500 = vcvt.s32.f32 %v1498
    %v1501 = vcvt.s32.f32 %v1499
    %v1502 = vlaneseq
    %v1503 = vshrl.u32 %v1502, 7
    %v1504 = vsub.s32 0, %v1503
    %v1505 = vrot.slane %v1500, %v1504
    %v1506 = vlaneseq
    %v1507 = vshrl.u32 %v1506, 7
    %v1508 = vsub.s32 0, %v1507
    %v1509 = vrot.slane %v1501, %v1508
    %v1510 = vmul.f32 %v1466, %v1505
    %v1511 = vmul.f32 %v1468, %v1509
    %v1512 = vmul.u32 %v1474, 16
    %v1513 = vmul.u32 %v1475, 16
    %v1514 = vrot.slane %v1474, 1
    %v1515 = vrot.slane %v1475, 1
    %v1516 = vadd.s32 %v1512, %v1514
    %v1517 = vadd.s32 %v1513, %v1515
    %v1518 = vlaneseq
    %v1519 = vshrl.u32 %v1518, 7
    %v1520 = vsub.s32 0, %v1519
    %v1521 = vrot.slane %v1516, %v1520
    %v1522 = vlaneseq
    %v1523 = vshrl.u32 %v1522, 7
    %v1524 = vsub.s32 0, %v1523
    %v1525 = vrot.slane %v1517, %v1524
    %vm1526 = vcmp.eq.s32.totalorder %v33, %v1521
    %vm1527 = vcmp.eq.s32.totalorder %v33, %v1525
    %vm1528 = vcmp.eq.s32.totalorder %v34, %v1521
    %vm1529 = vcmp.eq.s32.totalorder %v34, %v1525
    %vm1530 = vcmp.eq.s32.totalorder %v35, %v1521
    %vm1531 = vcmp.eq.s32.totalorder %v35, %v1525
    %vm1532 = vcmp.eq.s32.totalorder %v36, %v1521
    %vm1533 = vcmp.eq.s32.totalorder %v36, %v1525
    %vm1534 = vcmp.eq.s32.totalorder %v37, %v1521
    %vm1535 = vcmp.eq.s32.totalorder %v37, %v1525
    %vm1536 = vcmp.eq.s32.totalorder %v38, %v1521
    %vm1537 = vcmp.eq.s32.totalorder %v38, %v1525
    %vm1538 = vcmp.eq.s32.totalorder %v39, %v1521
    %vm1539 = vcmp.eq.s32.totalorder %v39, %v1525
    %vm1540 = vcmp.eq.s32.totalorder %v40, %v1521
    %vm1541 = vcmp.eq.s32.totalorder %v40, %v1525
    %vm1542 = vcmp.eq.s32.totalorder %v41, %v1521
    %vm1543 = vcmp.eq.s32.totalorder %v41, %v1525
    %vm1544 = vcmp.eq.s32.totalorder %v42, %v1521
    %vm1545 = vcmp.eq.s32.totalorder %v42, %v1525
    %vm1546 = vcmp.eq.s32.totalorder %v43, %v1521
    %vm1547 = vcmp.eq.s32.totalorder %v43, %v1525
    %vm1548 = vcmp.eq.s32.totalorder %v44, %v1521
    %vm1549 = vcmp.eq.s32.totalorder %v44, %v1525
    %vm1550 = vcmp.eq.s32.totalorder %v45, %v1521
    %vm1551 = vcmp.eq.s32.totalorder %v45, %v1525
    %vm1552 = vcmp.eq.s32.totalorder %v46, %v1521
    %vm1553 = vcmp.eq.s32.totalorder %v46, %v1525
    %vm1554 = vcmp.eq.s32.totalorder %v47, %v1521
    %vm1555 = vcmp.eq.s32.totalorder %v47, %v1525
    %vm1556 = vcmp.eq.s32.totalorder %v48, %v1521
    %vm1557 = vcmp.eq.s32.totalorder %v48, %v1525
    %vm1558 = vcmp.eq.s32.totalorder %v49, %v1521
    %vm1559 = vcmp.eq.s32.totalorder %v49, %v1525
    %vm1560 = vcmp.eq.s32.totalorder %v50, %v1521
    %vm1561 = vcmp.eq.s32.totalorder %v50, %v1525
    %vm1562 = vcmp.eq.s32.totalorder %v51, %v1521
    %vm1563 = vcmp.eq.s32.totalorder %v51, %v1525
    %vm1564 = vcmp.eq.s32.totalorder %v52, %v1521
    %vm1565 = vcmp.eq.s32.totalorder %v52, %v1525
    %vm1566 = vcmp.eq.s32.totalorder %v53, %v1521
    %vm1567 = vcmp.eq.s32.totalorder %v53, %v1525
    %vm1568 = vcmp.eq.s32.totalorder %v54, %v1521
    %vm1569 = vcmp.eq.s32.totalorder %v54, %v1525
    %vm1570 = vcmp.eq.s32.totalorder %v55, %v1521
    %vm1571 = vcmp.eq.s32.totalorder %v55, %v1525
    %vm1572 = vcmp.eq.s32.totalorder %v56, %v1521
    %vm1573 = vcmp.eq.s32.totalorder %v56, %v1525
    %vm1574 = vcmp.eq.s32.totalorder %v57, %v1521
    %vm1575 = vcmp.eq.s32.totalorder %v57, %v1525
    %vm1576 = vcmp.eq.s32.totalorder %v58, %v1521
    %vm1577 = vcmp.eq.s32.totalorder %v58, %v1525
    %vm1578 = vcmp.eq.s32.totalorder %v59, %v1521
    %vm1579 = vcmp.eq.s32.totalorder %v59, %v1525
    %vm1580 = vcmp.eq.s32.totalorder %v60, %v1521
    %vm1581 = vcmp.eq.s32.totalorder %v60, %v1525
    %vm1582 = vcmp.eq.s32.totalorder %v61, %v1521
    %vm1583 = vcmp.eq.s32.totalorder %v61, %v1525
    %vm1584 = vcmp.eq.s32.totalorder %v62, %v1521
    %vm1585 = vcmp.eq.s32.totalorder %v62, %v1525
    %vm1586 = vcmp.eq.s32.totalorder %v63, %v1521
    %vm1587 = vcmp.eq.s32.totalorder %v63, %v1525
    %vm1588 = vcmp.eq.s32.totalorder %v64, %v1521
    %vm1589 = vcmp.eq.s32.totalorder %v64, %v1525
    %v1590 = vsel %vm1526, 1, 0
    %v1591 = vsel %vm1527, 1, 0
    %v1592 = vsel %vm1528, 1, 0
    %v1593 = vsel %vm1529, 1, 0
    %v1594 = vsel %vm1530, 1, 0
    %v1595 = vsel %vm1531, 1, 0
    %v1596 = vsel %vm1532, 1, 0
    %v1597 = vsel %vm1533, 1, 0
    %v1598 = vsel %vm1534, 1, 0
    %v1599 = vsel %vm1535, 1, 0
    %v1600 = vsel %vm1536, 1, 0
    %v1601 = vsel %vm1537, 1, 0
    %v1602 = vsel %vm1538, 1, 0
    %v1603 = vsel %vm1539, 1, 0
    %v1604 = vsel %vm1540, 1, 0
    %v1605 = vsel %vm1541, 1, 0
    %v1606 = vsel %vm1542, 1, 0
    %v1607 = vsel %vm1543, 1, 0
    %v1608 = vsel %vm1544, 1, 0
    %v1609 = vsel %vm1545, 1, 0
    %v1610 = vsel %vm1546, 1, 0
    %v1611 = vsel %vm1547, 1, 0
    %v1612 = vsel %vm1548, 1, 0
    %v1613 = vsel %vm1549, 1, 0
    %v1614 = vsel %vm1550, 1, 0
    %v1615 = vsel %vm1551, 1, 0
    %v1616 = vsel %vm1552, 1, 0
    %v1617 = vsel %vm1553, 1, 0
    %v1618 = vsel %vm1554, 1, 0
    %v1619 = vsel %vm1555, 1, 0
    %v1620 = vsel %vm1556, 1, 0
    %v1621 = vsel %vm1557, 1, 0
    %v1622 = vsel %vm1558, 1, 0
    %v1623 = vsel %vm1559, 1, 0
    %v1624 = vsel %vm1560, 1, 0
    %v1625 = vsel %vm1561, 1, 0
    %v1626 = vsel %vm1562, 1, 0
    %v1627 = vsel %vm1563, 1, 0
    %v1628 = vsel %vm1564, 1, 0
    %v1629 = vsel %vm1565, 1, 0
    %v1630 = vsel %vm1566, 1, 0
    %v1631 = vsel %vm1567, 1, 0
    %v1632 = vsel %vm1568, 1, 0
    %v1633 = vsel %vm1569, 1, 0
    %v1634 = vsel %vm1570, 1, 0
    %v1635 = vsel %vm1571, 1, 0
    %v1636 = vsel %vm1572, 1, 0
    %v1637 = vsel %vm1573, 1, 0
    %v1638 = vsel %vm1574, 1, 0
    %v1639 = vsel %vm1575, 1, 0
    %v1640 = vsel %vm1576, 1, 0
    %v1641 = vsel %vm1577, 1, 0
    %v1642 = vsel %vm1578, 1, 0
    %v1643 = vsel %vm1579, 1, 0
    %v1644 = vsel %vm1580, 1, 0
    %v1645 = vsel %vm1581, 1, 0
    %v1646 = vsel %vm1582, 1, 0
    %v1647 = vsel %vm1583, 1, 0
    %v1648 = vsel %vm1584, 1, 0
    %v1649 = vsel %vm1585, 1, 0
    %v1650 = vsel %vm1586, 1, 0
    %v1651 = vsel %vm1587, 1, 0
    %v1652 = vsel %vm1588, 1, 0
    %v1653 = vsel %vm1589, 1, 0
    %v1654 = vcvt.s32.f32 %v1590
    %v1655 = vcvt.s32.f32 %v1591
    %v1656 = vcvt.s32.f32 %v1592
    %v1657 = vcvt.s32.f32 %v1593
    %v1658 = vcvt.s32.f32 %v1594
    %v1659 = vcvt.s32.f32 %v1595
    %v1660 = vcvt.s32.f32 %v1596
    %v1661 = vcvt.s32.f32 %v1597
    %v1662 = vcvt.s32.f32 %v1598
    %v1663 = vcvt.s32.f32 %v1599
    %v1664 = vcvt.s32.f32 %v1600
    %v1665 = vcvt.s32.f32 %v1601
    %v1666 = vcvt.s32.f32 %v1602
    %v1667 = vcvt.s32.f32 %v1603
    %v1668 = vcvt.s32.f32 %v1604
    %v1669 = vcvt.s32.f32 %v1605
    %v1670 = vcvt.s32.f32 %v1606
    %v1671 = vcvt.s32.f32 %v1607
    %v1672 = vcvt.s32.f32 %v1608
    %v1673 = vcvt.s32.f32 %v1609
    %v1674 = vcvt.s32.f32 %v1610
    %v1675 = vcvt.s32.f32 %v1611
    %v1676 = vcvt.s32.f32 %v1612
    %v1677 = vcvt.s32.f32 %v1613
    %v1678 = vcvt.s32.f32 %v1614
    %v1679 = vcvt.s32.f32 %v1615
    %v1680 = vcvt.s32.f32 %v1616
    %v1681 = vcvt.s32.f32 %v1617
    %v1682 = vcvt.s32.f32 %v1618
    %v1683 = vcvt.s32.f32 %v1619
    %v1684 = vcvt.s32.f32 %v1620
    %v1685 = vcvt.s32.f32 %v1621
    %v1686 = vcvt.s32.f32 %v1622
    %v1687 = vcvt.s32.f32 %v1623
    %v1688 = vcvt.s32.f32 %v1624
    %v1689 = vcvt.s32.f32 %v1625
    %v1690 = vcvt.s32.f32 %v1626
    %v1691 = vcvt.s32.f32 %v1627
    %v1692 = vcvt.s32.f32 %v1628
    %v1693 = vcvt.s32.f32 %v1629
    %v1694 = vcvt.s32.f32 %v1630
    %v1695 = vcvt.s32.f32 %v1631
    %v1696 = vcvt.s32.f32 %v1632
    %v1697 = vcvt.s32.f32 %v1633
    %v1698 = vcvt.s32.f32 %v1634
    %v1699 = vcvt.s32.f32 %v1635
    %v1700 = vcvt.s32.f32 %v1636
    %v1701 = vcvt.s32.f32 %v1637
    %v1702 = vcvt.s32.f32 %v1638
    %v1703 = vcvt.s32.f32 %v1639
    %v1704 = vcvt.s32.f32 %v1640
    %v1705 = vcvt.s32.f32 %v1641
    %v1706 = vcvt.s32.f32 %v1642
    %v1707 = vcvt.s32.f32 %v1643
    %v1708 = vcvt.s32.f32 %v1644
    %v1709 = vcvt.s32.f32 %v1645
    %v1710 = vcvt.s32.f32 %v1646
    %v1711 = vcvt.s32.f32 %v1647
    %v1712 = vcvt.s32.f32 %v1648
    %v1713 = vcvt.s32.f32 %v1649
    %v1714 = vcvt.s32.f32 %v1650
    %v1715 = vcvt.s32.f32 %v1651
    %v1716 = vcvt.s32.f32 %v1652
    %v1717 = vcvt.s32.f32 %v1653
    %1718 = vmatprep.subr.mxu0 %v1655
    %1719 = vmatpush1.xpose.msra.mxu0 %v1654
    %1720 = vmatprep.subr.mxu0 %v1657
    %1721 = vmatpush1.xpose.msra.mxu0 %v1656
    %1722 = vmatprep.subr.mxu0 %v1659
    %1723 = vmatpush1.xpose.msra.mxu0 %v1658
    %1724 = vmatprep.subr.mxu0 %v1661
    %1725 = vmatpush1.xpose.msra.mxu0 %v1660
    %1726 = vmatprep.subr.mxu0 %v1663
    %1727 = vmatpush1.xpose.msra.mxu0 %v1662
    %1728 = vmatprep.subr.mxu0 %v1665
    %1729 = vmatpush1.xpose.msra.mxu0 %v1664
    %1730 = vmatprep.subr.mxu0 %v1667
    %1731 = vmatpush1.xpose.msra.mxu0 %v1666
    %1732 = vmatprep.subr.mxu0 %v1669
    %1733 = vmatpush1.xpose.msra.mxu0 %v1668
    %1734 = vmatprep.subr.mxu0 %v1671
    %1735 = vmatpush1.xpose.msra.mxu0 %v1670
    %1736 = vmatprep.subr.mxu0 %v1673
    %1737 = vmatpush1.xpose.msra.mxu0 %v1672
    %1738 = vmatprep.subr.mxu0 %v1675
    %1739 = vmatpush1.xpose.msra.mxu0 %v1674
    %1740 = vmatprep.subr.mxu0 %v1677
    %1741 = vmatpush1.xpose.msra.mxu0 %v1676
    %1742 = vmatprep.subr.mxu0 %v1679
    %1743 = vmatpush1.xpose.msra.mxu0 %v1678
    %1744 = vmatprep.subr.mxu0 %v1681
    %1745 = vmatpush1.xpose.msra.mxu0 %v1680
    %1746 = vmatprep.subr.mxu0 %v1683
    %1747 = vmatpush1.xpose.msra.mxu0 %v1682
    %1748 = vmatprep.subr.mxu0 %v1685
    %1749 = vmatpush1.xpose.msra.mxu0 %v1684
    %1750 = vmatprep.subr.mxu0 %v1687
    %1751 = vmatpush1.xpose.msra.mxu0 %v1686
    %1752 = vmatprep.subr.mxu0 %v1689
    %1753 = vmatpush1.xpose.msra.mxu0 %v1688
    %1754 = vmatprep.subr.mxu0 %v1691
    %1755 = vmatpush1.xpose.msra.mxu0 %v1690
    %1756 = vmatprep.subr.mxu0 %v1693
    %1757 = vmatpush1.xpose.msra.mxu0 %v1692
    %1758 = vmatprep.subr.mxu0 %v1695
    %1759 = vmatpush1.xpose.msra.mxu0 %v1694
    %1760 = vmatprep.subr.mxu0 %v1697
    %1761 = vmatpush1.xpose.msra.mxu0 %v1696
    %1762 = vmatprep.subr.mxu0 %v1699
    %1763 = vmatpush1.xpose.msra.mxu0 %v1698
    %1764 = vmatprep.subr.mxu0 %v1701
    %1765 = vmatpush1.xpose.msra.mxu0 %v1700
    %1766 = vmatprep.subr.mxu0 %v1703
    %1767 = vmatpush1.xpose.msra.mxu0 %v1702
    %1768 = vmatprep.subr.mxu0 %v1705
    %1769 = vmatpush1.xpose.msra.mxu0 %v1704
    %1770 = vmatprep.subr.mxu0 %v1707
    %1771 = vmatpush1.xpose.msra.mxu0 %v1706
    %1772 = vmatprep.subr.mxu0 %v1709
    %1773 = vmatpush1.xpose.msra.mxu0 %v1708
    %1774 = vmatprep.subr.mxu0 %v1711
    %1775 = vmatpush1.xpose.msra.mxu0 %v1710
    %1776 = vmatprep.subr.mxu0 %v1713
    %1777 = vmatpush1.xpose.msra.mxu0 %v1712
    %1778 = vmatprep.subr.mxu0 %v1715
    %1779 = vmatpush1.xpose.msra.mxu0 %v1714
    %1780 = vmatprep.subr.mxu0 %v1717
    %1781 = vmatpush1.xpose.msra.mxu0 %v1716
    %1782 = vmatprep.mubr.f32.mxu0 %v1511
    %1783 = vmatmul.mubr.f32.gmra.mrb[0].mxu0 %v1510
    %v1784 = vpop.f32.mrb[0].mxu0
    %v1785 = vadd.f32 0.0, %v1784
    %v1786 = vpop.f32.mrb[0].mxu0
    %v1787 = vadd.f32 0.0, %v1786
    %1788 = vdwg.mxu0
    %v1789 = vadd.f32 %v1263, %v1785
    %v1790 = vadd.f32 %v1265, %v1787
    %v1791 = vlaneseq
    %v1792 = vshrl.u32 %v1791, 7
    %v1793 = vsub.s32 0, %v1792
    %v1794 = vrot.slane %v1311, %v1793
    %v1795 = vlaneseq
    %v1796 = vshrl.u32 %v1795, 7
    %v1797 = vsub.s32 0, %v1796
    %v1798 = vrot.slane %v1312, %v1797
    %v1799 = vmul.f32 %v70, %v1794
    %v1800 = vmul.f32 %v70, %v1798
    %v1801 = vlaneseq
    %v1802 = vshrl.u32 %v1801, 7
    %v1803 = vsub.s32 1, %v1802
    %v1804 = vrot.slane %v1311, %v1803
    %v1805 = vlaneseq
    %v1806 = vshrl.u32 %v1805, 7
    %v1807 = vsub.s32 1, %v1806
    %v1808 = vrot.slane %v1312, %v1807
    %v1809 = vmul.f32 %v95, %v1804
    %v1810 = vmul.f32 %v95, %v1808
    %v1811 = vadd.f32 %v1799, %v1809
    %v1812 = vadd.f32 %v1800, %v1810
    %v1813 = vlaneseq
    %v1814 = vshrl.u32 %v1813, 7
    %v1815 = vsub.s32 2, %v1814
    %v1816 = vrot.slane %v1315, %v1815
    %v1817 = vlaneseq
    %v1818 = vshrl.u32 %v1817, 7
    %v1819 = vsub.s32 2, %v1818
    %v1820 = vrot.slane %v1316, %v1819
    %v1821 = vmul.f32 %v121, %v1816
    %v1822 = vmul.f32 %v121, %v1820
    %v1823 = vadd.f32 %v1811, %v1821
    %v1824 = vadd.f32 %v1812, %v1822
    %v1825 = vadd.f32 %v1823, %v141
    %v1826 = vadd.f32 %v1824, %v141
    %v1827 = vand.u32 2147483647, %v1825
    %v1828 = vand.u32 2147483647, %v1826
    %v1829 = vadd.f32 %v1827, 1.0
    %v1830 = vadd.f32 %v1828, 1.0
    %v1831 = vrcp.pop %v1829
    %v1832 = vmul.f32 %v1825, %v1831
    %v1833 = vrcp.pop %v1830
    %v1834 = vmul.f32 %v1826, %v1833
    %v1835 = vmul.f32 %v1832, 1.5
    %v1836 = vmul.f32 %v1834, 1.5
    %v1837 = vmul.f32 %v1832, 0.5
    %v1838 = vmul.f32 %v1834, 0.5
    %v1839 = vadd.f32 %v1837, 0.5
    %v1840 = vadd.f32 %v1838, 0.5
    %v1841 = vmul.f32 %v1839, 15.0
    %v1842 = vmul.f32 %v1840, 15.0
    %v1843 = vfloor.f32 %v1841
    %v1844 = vfloor.f32 %v1842
    %v1845 = vceil.f32 %v1841
    %v1846 = vceil.f32 %v1842
    %v1847 = vsub.f32 %v1841, %v1843
    %v1848 = vsub.f32 %v1842, %v1844
    %v1849 = vcvt.f32.s32.to.zero.pseudo %v1843
    %v1850 = vcvt.f32.s32.to.zero.pseudo %v1844
    %v1851 = vcvt.f32.s32.to.zero.pseudo %v1845
    %v1852 = vcvt.f32.s32.to.zero.pseudo %v1846
    %v1853 = vlaneseq
    %v1854 = vshrl.u32 %v1853, 7
    %v1855 = vsub.s32 2, %v1854
    %v1856 = vrot.slane %v1849, %v1855
    %v1857 = vlaneseq
    %v1858 = vshrl.u32 %v1857, 7
    %v1859 = vsub.s32 2, %v1858
    %v1860 = vrot.slane %v1850, %v1859
    %vm1861 = vcmp.eq.s32.totalorder %v33, %v1856
    %vm1862 = vcmp.eq.s32.totalorder %v33, %v1860
    %vm1863 = vcmp.eq.s32.totalorder %v34, %v1856
    %vm1864 = vcmp.eq.s32.totalorder %v34, %v1860
    %v1865 = vsel %vm1861, 1, 0
    %v1866 = vsel %vm1862, 1, 0
    %v1867 = vsel %vm1863, 1, 0
    %v1868 = vsel %vm1864, 1, 0
    %v1869 = vcvt.s32.f32 %v1865
    %v1870 = vcvt.s32.f32 %v1866
    %v1871 = vcvt.s32.f32 %v1867
    %v1872 = vcvt.s32.f32 %v1868
    %v1873 = vsub.f32 1.0, %v1847
    %v1874 = vsub.f32 1.0, %v1848
    %v1875 = vlaneseq
    %v1876 = vshrl.u32 %v1875, 7
    %v1877 = vsub.s32 2, %v1876
    %v1878 = vrot.slane %v1873, %v1877
    %v1879 = vlaneseq
    %v1880 = vshrl.u32 %v1879, 7
    %v1881 = vsub.s32 2, %v1880
    %v1882 = vrot.slane %v1874, %v1881
    %v1883 = vmul.f32 %v1869, %v1878
    %v1884 = vmul.f32 %v1870, %v1882
    %v1885 = vmul.f32 %v1871, %v1878
    %v1886 = vmul.f32 %v1872, %v1882
    %v1887 = vlaneseq
    %v1888 = vshrl.u32 %v1887, 7
    %v1889 = vsub.s32 2, %v1888
    %v1890 = vrot.slane %v1851, %v1889
    %v1891 = vlaneseq
    %v1892 = vshrl.u32 %v1891, 7
    %v1893 = vsub.s32 2, %v1892
    %v1894 = vrot.slane %v1852, %v1893
    %vm1895 = vcmp.eq.s32.totalorder %v33, %v1890
    %vm1896 = vcmp.eq.s32.totalorder %v33, %v1894
    %vm1897 = vcmp.eq.s32.totalorder %v34, %v1890
    %vm1898 = vcmp.eq.s32.totalorder %v34, %v1894
    %v1899 = vsel %vm1895, 1, 0
    %v1900 = vsel %vm1896, 1, 0
    %v1901 = vsel %vm1897, 1, 0
    %v1902 = vsel %vm1898, 1, 0
    %v1903 = vcvt.s32.f32 %v1899
    %v1904 = vcvt.s32.f32 %v1900
    %v1905 = vcvt.s32.f32 %v1901
    %v1906 = vcvt.s32.f32 %v1902
    %v1907 = vlaneseq
    %v1908 = vshrl.u32 %v1907, 7
    %v1909 = vsub.s32 2, %v1908
    %v1910 = vrot.slane %v1847, %v1909
    %v1911 = vlaneseq
    %v1912 = vshrl.u32 %v1911, 7
    %v1913 = vsub.s32 2, %v1912
    %v1914 = vrot.slane %v1848, %v1913
    %v1915 = vmul.f32 %v1903, %v1910
    %v1916 = vmul.f32 %v1904, %v1914
    %v1917 = vmul.f32 %v1905, %v1910
    %v1918 = vmul.f32 %v1906, %v1914
    %v1919 = vadd.f32 %v1883, %v1915
    %v1920 = vadd.f32 %v1884, %v1916
    %v1921 = vadd.f32 %v1885, %v1917
    %v1922 = vadd.f32 %v1886, %v1918
    %1923 = vmatprep.subr.mxu0 %v1920
    %1924 = vmatpush1.msra.mxu0 %v1919
    %1925 = vmatprep.subr.mxu0 %v1922
    %1926 = vmatpush1.msra.mxu0 %v1921
    %1927 = vmatprep.subr.mxu0 0.0
    %1928 = vmatpush1.msra.mxu0 0.0
    %1929 = vmatprep.subr.mxu0 0.0
    %1930 = vmatpush1.msra.mxu0 0.0
    %1931 = vmatprep.subr.mxu0 0.0
    %1932 = vmatpush1.msra.mxu0 0.0
    %1933 = vmatprep.subr.mxu0 0.0
    %1934 = vmatpush1.msra.mxu0 0.0
    %1935 = vmatprep.subr.mxu0 0.0
    %1936 = vmatpush1.msra.mxu0 0.0
    %1937 = vmatprep.subr.mxu0 0.0
    %1938 = vmatpush1.msra.mxu0 0.0
    %1939 = vmatprep.subr.mxu0 0.0
    %1940 = vmatpush1.msra.mxu0 0.0
    %1941 = vmatprep.subr.mxu0 0.0
    %1942 = vmatpush1.msra.mxu0 0.0
    %1943 = vmatprep.subr.mxu0 0.0
    %1944 = vmatpush1.msra.mxu0 0.0
    %1945 = vmatprep.subr.mxu0 0.0
    %1946 = vmatpush1.msra.mxu0 0.0
    %1947 = vmatprep.subr.mxu0 0.0
    %1948 = vmatpush1.msra.mxu0 0.0
    %1949 = vmatprep.subr.mxu0 0.0
    %1950 = vmatpush1.msra.mxu0 0.0
    %1951 = vmatprep.subr.mxu0 0.0
    %1952 = vmatpush1.msra.mxu0 0.0
    %1953 = vmatprep.subr.mxu0 0.0
    %1954 = vmatpush1.msra.mxu0 0.0
    %1955 = vmatprep.subr.mxu0 0.0
    %1956 = vmatpush1.msra.mxu0 0.0
    %1957 = vmatprep.subr.mxu0 0.0
    %1958 = vmatpush1.msra.mxu0 0.0
    %1959 = vmatprep.subr.mxu0 0.0
    %1960 = vmatpush1.msra.mxu0 0.0
    %1961 = vmatprep.subr.mxu0 0.0
    %1962 = vmatpush1.msra.mxu0 0.0
    %1963 = vmatprep.subr.mxu0 0.0
    %1964 = vmatpush1.msra.mxu0 0.0
    %1965 = vmatprep.subr.mxu0 0.0
    %1966 = vmatpush1.msra.mxu0 0.0
    %1967 = vmatprep.subr.mxu0 0.0
    %1968 = vmatpush1.msra.mxu0 0.0
    %1969 = vmatprep.subr.mxu0 0.0
    %1970 = vmatpush1.msra.mxu0 0.0
    %1971 = vmatprep.subr.mxu0 0.0
    %1972 = vmatpush1.msra.mxu0 0.0
    %1973 = vmatprep.subr.mxu0 0.0
    %1974 = vmatpush1.msra.mxu0 0.0
    %1975 = vmatprep.subr.mxu0 0.0
    %1976 = vmatpush1.msra.mxu0 0.0
    %1977 = vmatprep.subr.mxu0 0.0
    %1978 = vmatpush1.msra.mxu0 0.0
    %1979 = vmatprep.subr.mxu0 0.0
    %1980 = vmatpush1.msra.mxu0 0.0
    %1981 = vmatprep.subr.mxu0 0.0
    %1982 = vmatpush1.msra.mxu0 0.0
    %1983 = vmatprep.subr.mxu0 0.0
    %1984 = vmatpush1.msra.mxu0 0.0
    %1985 = vmatprep.subr.mxu0 0.0
    %1986 = vmatpush1.msra.mxu0 0.0
    %1987 = vmatprep.mubr.f32.mxu0 0.0
    %1988 = vmatmul.mubr.f32.gmra.mrb[0].mxu0 %v343
    %v1989 = vpop.f32.mrb[0].mxu0
    %v1990 = vadd.f32 0.0, %v1989
    %v1991 = vpop.f32.mrb[0].mxu0
    %v1992 = vadd.f32 0.0, %v1991
    %1993 = vdwg.mxu0
    %v1994 = vsub.f32 %v1835, %v419
    %v1995 = vsub.f32 %v1836, %v419
    %v1996 = vmul.f32 %v1994, %v426
    %v1997 = vmul.f32 %v1995, %v426
    %v1998 = vcvt.f32.s32.to.zero.pseudo %v1996
    %v1999 = vcvt.f32.s32.to.zero.pseudo %v1997
    %vm2000 = vcmp.ge.s32.totalorder %v1998, 0
    %vm2001 = vcmp.ge.s32.totalorder %v1999, 0
    %vm2002 = vcmp.lt.s32.totalorder %v1998, 16
    %vm2003 = vcmp.lt.s32.totalorder %v1999, 16
    %vm2004 = vmand %vm2000, %vm2002
    %vm2005 = vmand %vm2001, %vm2003
    %v2006 = vsel %vm2000, 1, 0
    %v2007 = vsel %vm2001, 1, 0
    %v2008 = vrot.slane %v2006, 1
    %v2009 = vrot.slane %v2007, 1
    %vm2010 = vcmp.ne.s32.totalorder %v2008, 0
    %vm2011 = vcmp.ne.s32.totalorder %v2009, 0
    %vm2012 = vmand %vm2004, %vm2010
    %vm2013 = vmand %vm2005, %vm2011
    %v2014 = vsel %vm2002, 1, 0
    %v2015 = vsel %vm2003, 1, 0
    %v2016 = vrot.slane %v2014, 1
    %v2017 = vrot.slane %v2015, 1
    %vm2018 = vcmp.ne.s32.totalorder %v2016, 0
    %vm2019 = vcmp.ne.s32.totalorder %v2017, 0
    %vm2020 = vmand %vm2012, %vm2018
    %vm2021 = vmand %vm2013, %vm2019
    %v2022 = vsel %vm2020, 1, 0
    %v2023 = vsel %vm2021, 1, 0
    %v2024 = vcvt.s32.f32 %v2022
    %v2025 = vcvt.s32.f32 %v2023
    %v2026 = vlaneseq
    %v2027 = vshrl.u32 %v2026, 7
    %v2028 = vsub.s32 0, %v2027
    %v2029 = vrot.slane %v2024, %v2028
    %v2030 = vlaneseq
    %v2031 = vshrl.u32 %v2030, 7
    %v2032 = vsub.s32 0, %v2031
    %v2033 = vrot.slane %v2025, %v2032
    %v2034 = vmul.f32 %v1990, %v2029
    %v2035 = vmul.f32 %v1992, %v2033
    %v2036 = vmul.u32 %v1998, 16
    %v2037 = vmul.u32 %v1999, 16
    %v2038 = vrot.slane %v1998, 1
    %v2039 = vrot.slane %v1999, 1
    %v2040 = vadd.s32 %v2036, %v2038
    %v2041 = vadd.s32 %v2037, %v2039
    %v2042 = vlaneseq
    %v2043 = vshrl.u32 %v2042, 7
    %v2044 = vsub.s32 0, %v2043
    %v2045 = vrot.slane %v2040, %v2044
    %v2046 = vlaneseq
    %v2047 = vshrl.u32 %v2046, 7
    %v2048 = vsub.s32 0, %v2047
    %v2049 = vrot.slane %v2041, %v2048
    %vm2050 = vcmp.eq.s32.totalorder %v33, %v2045
    %vm2051 = vcmp.eq.s32.totalorder %v33, %v2049
    %vm2052 = vcmp.eq.s32.totalorder %v34, %v2045
    %vm2053 = vcmp.eq.s32.totalorder %v34, %v2049
    %vm2054 = vcmp.eq.s32.totalorder %v35, %v2045
    %vm2055 = vcmp.eq.s32.totalorder %v35, %v2049
    %vm2056 = vcmp.eq.s32.totalorder %v36, %v2045
    %vm2057 = vcmp.eq.s32.totalorder %v36, %v2049
    %vm2058 = vcmp.eq.s32.totalorder %v37, %v2045
    %vm2059 = vcmp.eq.s32.totalorder %v37, %v2049
    %vm2060 = vcmp.eq.s32.totalorder %v38, %v2045
    %vm2061 = vcmp.eq.s32.totalorder %v38, %v2049
    %vm2062 = vcmp.eq.s32.totalorder %v39, %v2045
    %vm2063 = vcmp.eq.s32.totalorder %v39, %v2049
    %vm2064 = vcmp.eq.s32.totalorder %v40, %v2045
    %vm2065 = vcmp.eq.s32.totalorder %v40, %v2049
    %vm2066 = vcmp.eq.s32.totalorder %v41, %v2045
    %vm2067 = vcmp.eq.s32.totalorder %v41, %v2049
    %vm2068 = vcmp.eq.s32.totalorder %v42, %v2045
    %vm2069 = vcmp.eq.s32.totalorder %v42, %v2049
    %vm2070 = vcmp.eq.s32.totalorder %v43, %v2045
    %vm2071 = vcmp.eq.s32.totalorder %v43, %v2049
    %vm2072 = vcmp.eq.s32.totalorder %v44, %v2045
    %vm2073 = vcmp.eq.s32.totalorder %v44, %v2049
    %vm2074 = vcmp.eq.s32.totalorder %v45, %v2045
    %vm2075 = vcmp.eq.s32.totalorder %v45, %v2049
    %vm2076 = vcmp.eq.s32.totalorder %v46, %v2045
    %vm2077 = vcmp.eq.s32.totalorder %v46, %v2049
    %vm2078 = vcmp.eq.s32.totalorder %v47, %v2045
    %vm2079 = vcmp.eq.s32.totalorder %v47, %v2049
    %vm2080 = vcmp.eq.s32.totalorder %v48, %v2045
    %vm2081 = vcmp.eq.s32.totalorder %v48, %v2049
    %vm2082 = vcmp.eq.s32.totalorder %v49, %v2045
    %vm2083 = vcmp.eq.s32.totalorder %v49, %v2049
    %vm2084 = vcmp.eq.s32.totalorder %v50, %v2045
    %vm2085 = vcmp.eq.s32.totalorder %v50, %v2049
    %vm2086 = vcmp.eq.s32.totalorder %v51, %v2045
    %vm2087 = vcmp.eq.s32.totalorder %v51, %v2049
    %vm2088 = vcmp.eq.s32.totalorder %v52, %v2045
    %vm2089 = vcmp.eq.s32.totalorder %v52, %v2049
    %vm2090 = vcmp.eq.s32.totalorder %v53, %v2045
    %vm2091 = vcmp.eq.s32.totalorder %v53, %v2049
    %vm2092 = vcmp.eq.s32.totalorder %v54, %v2045
    %vm2093 = vcmp.eq.s32.totalorder %v54, %v2049
    %vm2094 = vcmp.eq.s32.totalorder %v55, %v2045
    %vm2095 = vcmp.eq.s32.totalorder %v55, %v2049
    %vm2096 = vcmp.eq.s32.totalorder %v56, %v2045
    %vm2097 = vcmp.eq.s32.totalorder %v56, %v2049
    %vm2098 = vcmp.eq.s32.totalorder %v57, %v2045
    %vm2099 = vcmp.eq.s32.totalorder %v57, %v2049
    %vm2100 = vcmp.eq.s32.totalorder %v58, %v2045
    %vm2101 = vcmp.eq.s32.totalorder %v58, %v2049
    %vm2102 = vcmp.eq.s32.totalorder %v59, %v2045
    %vm2103 = vcmp.eq.s32.totalorder %v59, %v2049
    %vm2104 = vcmp.eq.s32.totalorder %v60, %v2045
    %vm2105 = vcmp.eq.s32.totalorder %v60, %v2049
    %vm2106 = vcmp.eq.s32.totalorder %v61, %v2045
    %vm2107 = vcmp.eq.s32.totalorder %v61, %v2049
    %vm2108 = vcmp.eq.s32.totalorder %v62, %v2045
    %vm2109 = vcmp.eq.s32.totalorder %v62, %v2049
    %vm2110 = vcmp.eq.s32.totalorder %v63, %v2045
    %vm2111 = vcmp.eq.s32.totalorder %v63, %v2049
    %vm2112 = vcmp.eq.s32.totalorder %v64, %v2045
    %vm2113 = vcmp.eq.s32.totalorder %v64, %v2049
    %v2114 = vsel %vm2050, 1, 0
    %v2115 = vsel %vm2051, 1, 0
    %v2116 = vsel %vm2052, 1, 0
    %v2117 = vsel %vm2053, 1, 0
    %v2118 = vsel %vm2054, 1, 0
    %v2119 = vsel %vm2055, 1, 0
    %v2120 = vsel %vm2056, 1, 0
    %v2121 = vsel %vm2057, 1, 0
    %v2122 = vsel %vm2058, 1, 0
    %v2123 = vsel %vm2059, 1, 0
    %v2124 = vsel %vm2060, 1, 0
    %v2125 = vsel %vm2061, 1, 0
    %v2126 = vsel %vm2062, 1, 0
    %v2127 = vsel %vm2063, 1, 0
    %v2128 = vsel %vm2064, 1, 0
    %v2129 = vsel %vm2065, 1, 0
    %v2130 = vsel %vm2066, 1, 0
    %v2131 = vsel %vm2067, 1, 0
    %v2132 = vsel %vm2068, 1, 0
    %v2133 = vsel %vm2069, 1, 0
    %v2134 = vsel %vm2070, 1, 0
    %v2135 = vsel %vm2071, 1, 0
    %v2136 = vsel %vm2072, 1, 0
    %v2137 = vsel %vm2073, 1, 0
    %v2138 = vsel %vm2074, 1, 0
    %v2139 = vsel %vm2075, 1, 0
    %v2140 = vsel %vm2076, 1, 0
    %v2141 = vsel %vm2077, 1, 0
    %v2142 = vsel %vm2078, 1, 0
    %v2143 = vsel %vm2079, 1, 0
    %v2144 = vsel %vm2080, 1, 0
    %v2145 = vsel %vm2081, 1, 0
    %v2146 = vsel %vm2082, 1, 0
    %v2147 = vsel %vm2083, 1, 0
    %v2148 = vsel %vm2084, 1, 0
    %v2149 = vsel %vm2085, 1, 0
    %v2150 = vsel %vm2086, 1, 0
    %v2151 = vsel %vm2087, 1, 0
    %v2152 = vsel %vm2088, 1, 0
    %v2153 = vsel %vm2089, 1, 0
    %v2154 = vsel %vm2090, 1, 0
    %v2155 = vsel %vm2091, 1, 0
    %v2156 = vsel %vm2092, 1, 0
    %v2157 = vsel %vm2093, 1, 0
    %v2158 = vsel %vm2094, 1, 0
    %v2159 = vsel %vm2095, 1, 0
    %v2160 = vsel %vm2096, 1, 0
    %v2161 = vsel %vm2097, 1, 0
    %v2162 = vsel %vm2098, 1, 0
    %v2163 = vsel %vm2099, 1, 0
    %v2164 = vsel %vm2100, 1, 0
    %v2165 = vsel %vm2101, 1, 0
    %v2166 = vsel %vm2102, 1, 0
    %v2167 = vsel %vm2103, 1, 0
    %v2168 = vsel %vm2104, 1, 0
    %v2169 = vsel %vm2105, 1, 0
    %v2170 = vsel %vm2106, 1, 0
    %v2171 = vsel %vm2107, 1, 0
    %v2172 = vsel %vm2108, 1, 0
    %v2173 = vsel %vm2109, 1, 0
    %v2174 = vsel %vm2110, 1, 0
    %v2175 = vsel %vm2111, 1, 0
    %v2176 = vsel %vm2112, 1, 0
    %v2177 = vsel %vm2113, 1, 0
    %v2178 = vcvt.s32.f32 %v2114
    %v2179 = vcvt.s32.f32 %v2115
    %v2180 = vcvt.s32.f32 %v2116
    %v2181 = vcvt.s32.f32 %v2117
    %v2182 = vcvt.s32.f32 %v2118
    %v2183 = vcvt.s32.f32 %v2119
    %v2184 = vcvt.s32.f32 %v2120
    %v2185 = vcvt.s32.f32 %v2121
    %v2186 = vcvt.s32.f32 %v2122
    %v2187 = vcvt.s32.f32 %v2123
    %v2188 = vcvt.s32.f32 %v2124
    %v2189 = vcvt.s32.f32 %v2125
    %v2190 = vcvt.s32.f32 %v2126
    %v2191 = vcvt.s32.f32 %v2127
    %v2192 = vcvt.s32.f32 %v2128
    %v2193 = vcvt.s32.f32 %v2129
    %v2194 = vcvt.s32.f32 %v2130
    %v2195 = vcvt.s32.f32 %v2131
    %v2196 = vcvt.s32.f32 %v2132
    %v2197 = vcvt.s32.f32 %v2133
    %v2198 = vcvt.s32.f32 %v2134
    %v2199 = vcvt.s32.f32 %v2135
    %v2200 = vcvt.s32.f32 %v2136
    %v2201 = vcvt.s32.f32 %v2137
    %v2202 = vcvt.s32.f32 %v2138
    %v2203 = vcvt.s32.f32 %v2139
    %v2204 = vcvt.s32.f32 %v2140
    %v2205 = vcvt.s32.f32 %v2141
    %v2206 = vcvt.s32.f32 %v2142
    %v2207 = vcvt.s32.f32 %v2143
    %v2208 = vcvt.s32.f32 %v2144
    %v2209 = vcvt.s32.f32 %v2145
    %v2210 = vcvt.s32.f32 %v2146
    %v2211 = vcvt.s32.f32 %v2147
    %v2212 = vcvt.s32.f32 %v2148
    %v2213 = vcvt.s32.f32 %v2149
    %v2214 = vcvt.s32.f32 %v2150
    %v2215 = vcvt.s32.f32 %v2151
    %v2216 = vcvt.s32.f32 %v2152
    %v2217 = vcvt.s32.f32 %v2153
    %v2218 = vcvt.s32.f32 %v2154
    %v2219 = vcvt.s32.f32 %v2155
    %v2220 = vcvt.s32.f32 %v2156
    %v2221 = vcvt.s32.f32 %v2157
    %v2222 = vcvt.s32.f32 %v2158
    %v2223 = vcvt.s32.f32 %v2159
    %v2224 = vcvt.s32.f32 %v2160
    %v2225 = vcvt.s32.f32 %v2161
    %v2226 = vcvt.s32.f32 %v2162
    %v2227 = vcvt.s32.f32 %v2163
    %v2228 = vcvt.s32.f32 %v2164
    %v2229 = vcvt.s32.f32 %v2165
    %v2230 = vcvt.s32.f32 %v2166
    %v2231 = vcvt.s32.f32 %v2167
    %v2232 = vcvt.s32.f32 %v2168
    %v2233 = vcvt.s32.f32 %v2169
    %v2234 = vcvt.s32.f32 %v2170
    %v2235 = vcvt.s32.f32 %v2171
    %v2236 = vcvt.s32.f32 %v2172
    %v2237 = vcvt.s32.f32 %v2173
    %v2238 = vcvt.s32.f32 %v2174
    %v2239 = vcvt.s32.f32 %v2175
    %v2240 = vcvt.s32.f32 %v2176
    %v2241 = vcvt.s32.f32 %v2177
    %2242 = vmatprep.subr.mxu0 %v2179
    %2243 = vmatpush1.xpose.msra.mxu0 %v2178
    %2244 = vmatprep.subr.mxu0 %v2181
    %2245 = vmatpush1.xpose.msra.mxu0 %v2180
    %2246 = vmatprep.subr.mxu0 %v2183
    %2247 = vmatpush1.xpose.msra.mxu0 %v2182
    %2248 = vmatprep.subr.mxu0 %v2185
    %2249 = vmatpush1.xpose.msra.mxu0 %v2184
    %2250 = vmatprep.subr.mxu0 %v2187
    %2251 = vmatpush1.xpose.msra.mxu0 %v2186
    %2252 = vmatprep.subr.mxu0 %v2189
    %2253 = vmatpush1.xpose.msra.mxu0 %v2188
    %2254 = vmatprep.subr.mxu0 %v2191
    %2255 = vmatpush1.xpose.msra.mxu0 %v2190
    %2256 = vmatprep.subr.mxu0 %v2193
    %2257 = vmatpush1.xpose.msra.mxu0 %v2192
    %2258 = vmatprep.subr.mxu0 %v2195
    %2259 = vmatpush1.xpose.msra.mxu0 %v2194
    %2260 = vmatprep.subr.mxu0 %v2197
    %2261 = vmatpush1.xpose.msra.mxu0 %v2196
    %2262 = vmatprep.subr.mxu0 %v2199
    %2263 = vmatpush1.xpose.msra.mxu0 %v2198
    %2264 = vmatprep.subr.mxu0 %v2201
    %2265 = vmatpush1.xpose.msra.mxu0 %v2200
    %2266 = vmatprep.subr.mxu0 %v2203
    %2267 = vmatpush1.xpose.msra.mxu0 %v2202
    %2268 = vmatprep.subr.mxu0 %v2205
    %2269 = vmatpush1.xpose.msra.mxu0 %v2204
    %2270 = vmatprep.subr.mxu0 %v2207
    %2271 = vmatpush1.xpose.msra.mxu0 %v2206
    %2272 = vmatprep.subr.mxu0 %v2209
    %2273 = vmatpush1.xpose.msra.mxu0 %v2208
    %2274 = vmatprep.subr.mxu0 %v2211
    %2275 = vmatpush1.xpose.msra.mxu0 %v2210
    %2276 = vmatprep.subr.mxu0 %v2213
    %2277 = vmatpush1.xpose.msra.mxu0 %v2212
    %2278 = vmatprep.subr.mxu0 %v2215
    %2279 = vmatpush1.xpose.msra.mxu0 %v2214
    %2280 = vmatprep.subr.mxu0 %v2217
    %2281 = vmatpush1.xpose.msra.mxu0 %v2216
    %2282 = vmatprep.subr.mxu0 %v2219
    %2283 = vmatpush1.xpose.msra.mxu0 %v2218
    %2284 = vmatprep.subr.mxu0 %v2221
    %2285 = vmatpush1.xpose.msra.mxu0 %v2220
    %2286 = vmatprep.subr.mxu0 %v2223
    %2287 = vmatpush1.xpose.msra.mxu0 %v2222
    %2288 = vmatprep.subr.mxu0 %v2225
    %2289 = vmatpush1.xpose.msra.mxu0 %v2224
    %2290 = vmatprep.subr.mxu0 %v2227
    %2291 = vmatpush1.xpose.msra.mxu0 %v2226
    %2292 = vmatprep.subr.mxu0 %v2229
    %2293 = vmatpush1.xpose.msra.mxu0 %v2228
    %2294 = vmatprep.subr.mxu0 %v2231
    %2295 = vmatpush1.xpose.msra.mxu0 %v2230
    %2296 = vmatprep.subr.mxu0 %v2233
    %2297 = vmatpush1.xpose.msra.mxu0 %v2232
    %2298 = vmatprep.subr.mxu0 %v2235
    %2299 = vmatpush1.xpose.msra.mxu0 %v2234
    %2300 = vmatprep.subr.mxu0 %v2237
    %2301 = vmatpush1.xpose.msra.mxu0 %v2236
    %2302 = vmatprep.subr.mxu0 %v2239
    %2303 = vmatpush1.xpose.msra.mxu0 %v2238
    %2304 = vmatprep.subr.mxu0 %v2241
    %2305 = vmatpush1.xpose.msra.mxu0 %v2240
    %2306 = vmatprep.mubr.f32.mxu0 %v2035
    %2307 = vmatmul.mubr.f32.gmra.mrb[0].mxu0 %v2034
    %v2308 = vpop.f32.mrb[0].mxu0
    %v2309 = vadd.f32 0.0, %v2308
    %v2310 = vpop.f32.mrb[0].mxu0
    %v2311 = vadd.f32 0.0, %v2310
    %2312 = vdwg.mxu0
    %v2313 = vadd.f32 %v1789, %v2309
    %v2314 = vadd.f32 %v1790, %v2311
    %v2317 = vcombine.low %v2313, %v2314
    %2319 = vst [vmem:[#allocation2] sm:$0xff] %v2317
    // Predicated region
    $region30: #{tpu_custom_call.1} parent=1 // pred_check
      _
    $region31: #{tpu_custom_call.1} parent=1 // pred_check_branch
      %2321 = sbr.rel (0) target = $region33
    $region32: #{tpu_custom_call.1} parent=1 // pred_region
      %s2323 = ssub.s32 128, 128
      %2324 = vsyncadd [#allocation3], %s2323
      %s2326 = sshll.u32 [#allocation2], 4
      %s2327 = int_to_ptr.vmem [resolvable:$true] %s2326
      %2329 = dma.vmem_to_hbm [thread:$0]  %s2327, 128, %s7, [#allocation3]
    $region33: #{tpu_custom_call.1} parent=1 // pred_fallthru
      _
    // Predicated region
    $region34: #{tpu_custom_call.1} parent=1 // pred_check
      _
    $region35: #{tpu_custom_call.1} parent=1 // pred_check_branch
      %2331 = sbr.rel (0) target = $region37
    $region36: #{tpu_custom_call.1} parent=1 // pred_region
      %2332 = dma.done [#allocation3], 128
    $region37: #{tpu_custom_call.1} parent=1 // pred_fallthru
      _
    %2333 = vsyncpa [#allocation3], 1

</llo_original>
